<compile_context>
chip_gen: v6e
topology: v6e:2x2x1
jax: 0.10.0
libtpu: 0.0.40
codegen_flags: <defaults>
</compile_context>

<pallas_src>
import jax
import jax.numpy as jnp
from jax.experimental import pallas as pl
from jax.experimental.pallas import tpu as pltpu

C = 4          # flow channels
C_SFT = 4      # SFT-condition channels
CLAMP = 1.0
VMEM_BUDGET_BYTES = 20 * 1024 * 1024   # double-buffered block-set budget (v7x safe)

# TODO(synk): `net_forward` is NotImplementedError in the reference module; a
# concrete SFT 1x1-conv conditional net is used here (documented above).


def _choose_h_tile(h, w, n_batch, c_flow, c_sft, itemsize,
                   vmem_budget=VMEM_BUDGET_BYTES, max_h_tile=None):
    """Largest multiple-of-8 divisor of H whose double-buffered block set fits VMEM."""
    if h % 8 != 0:
        # TODO(synk): ragged H (not a multiple of 8) falls back to a whole-image block.
        return h
    # Per H-row of one block set: x + code + out (c_flow each) + sft_cond, x2 buffers.
    bytes_per_h_row = 2 * (3 * c_flow + c_sft) * w * itemsize
    cap = max(8, vmem_budget // max(1, bytes_per_h_row))
    if max_h_tile is not None:
        cap = min(cap, max_h_tile)
    best = 8
    t = 8
    while t <= h:
        if h % t == 0 and t <= cap:
            best = t
        t += 8
    # v7x has 2 TensorCores: keep >=2 grid blocks when the batch axis has only one.
    if n_batch == 1 and best == h:
        t = best - 8
        while t >= 8:
            if h % t == 0:
                return t
            t -= 8
    return best


def _make_kernel(c_flow, c_sft, clamp):
    two_c = 2 * c_flow

    def kernel(x_ref, sft_ref, code_ref,
               w_sft_ref, b_sft_ref, w_out_ref, b_out_ref,
               out_ref, jac_ref):
        # Blocks: (1, C, H_TILE, W); per-channel slabs are dense (H_TILE, W) tiles.
        # Hoist all SMEM scalar weight/bias reads once per grid step.
        w_sft = [[w_sft_ref[ci, co] for co in range(two_c)] for ci in range(c_sft)]
        b_sft = [b_sft_ref[co] for co in range(two_c)]
        w_out = [[w_out_ref[ci, co] for co in range(two_c)] for ci in range(c_flow)]
        b_out = [b_out_ref[co] for co in range(two_c)]

        x = [x_ref[0, ci].astype(jnp.float32) for ci in range(c_flow)]      # (HT, W)
        sft = [sft_ref[0, ci].astype(jnp.float32) for ci in range(c_sft)]   # (HT, W)

        def conv(rows, w, b, co):
            # 1x1-conv output channel `co`: scalar-broadcast VPU FMAs (no MXU for C=4).
            acc = rows[0] * w[0][co] + b[co]
            for ci in range(1, len(rows)):
                acc = acc + rows[ci] * w[ci][co]
            return acc

        # net_forward: gamma/beta = conv1x1_sft(sft_cond); mod = x*gamma + beta
        mod = []
        for ci in range(c_flow):
            gamma = conv(sft, w_sft, b_sft, ci)
            beta = conv(sft, w_sft, b_sft, c_flow + ci)
            mod.append(x[ci] * gamma + beta)

        # condition = conv1x1_out(mod); chunk(2, dim=channel) -> (loc, raw_scale)
        scale_sum = None
        for ci in range(c_flow):
            loc = conv(mod, w_out, b_out, ci)
            raw = conv(mod, w_out, b_out, c_flow + ci)
            # clamp * (sigmoid(raw)*2 - 1) == clamp * tanh(raw/2)  (single EUP op)
            scale = clamp * jnp.tanh(0.5 * raw)
            code_c = code_ref[0, ci].astype(jnp.float32)
            out_ref[0, ci] = (code_c * jnp.exp(scale) + loc).astype(out_ref.dtype)
            scale_sum = scale if scale_sum is None else scale_sum + scale

        # One cross-lane reduction per tile; store as an (8,128)-aligned partial.
        jac_partial = jnp.sum(scale_sum)
        jac_ref[0, 0] = jnp.full(jac_ref.shape[2:], jac_partial, dtype=jac_ref.dtype)

    return kernel


def sft_cond_anf_forward(x_nchw, sft_nchw, code_nchw, w_sft, b_sft, w_out, b_out,
                         max_h_tile=None):
    n, c, h, w = x_nchw.shape
    c_sft = sft_nchw.shape[1]
    itemsize = jnp.dtype(x_nchw.dtype).itemsize

    h_tile = _choose_h_tile(h, w, n, c, c_sft, itemsize, max_h_tile=max_h_tile)
    n_ht = max(1, h // h_tile)

    kernel = _make_kernel(c, c_sft, CLAMP)

    out_shape = (
        jax.ShapeDtypeStruct((n, c, h, w), x_nchw.dtype),       # code_out (native NCHW)
        jax.ShapeDtypeStruct((n, n_ht, 8, 128), jnp.float32),   # per-tile jac partials
    )

    code_out, jac_tiles = pl.pallas_call(
        kernel,
        out_shape=out_shape,
        grid=(n, n_ht),
        in_specs=[
            pl.BlockSpec((1, c, h_tile, w), lambda i, j: (i, 0, j, 0)),      # x
            pl.BlockSpec((1, c_sft, h_tile, w), lambda i, j: (i, 0, j, 0)),  # sft_cond
            pl.BlockSpec((1, c, h_tile, w), lambda i, j: (i, 0, j, 0)),      # code
            pl.BlockSpec(memory_space=pltpu.MemorySpace.SMEM),               # w_sft (C_SFT, 2C)
            pl.BlockSpec(memory_space=pltpu.MemorySpace.SMEM),               # b_sft (2C,)
            pl.BlockSpec(memory_space=pltpu.MemorySpace.SMEM),               # w_out (C, 2C)
            pl.BlockSpec(memory_space=pltpu.MemorySpace.SMEM),               # b_out (2C,)
        ],
        out_specs=(
            pl.BlockSpec((1, c, h_tile, w), lambda i, j: (i, 0, j, 0)),      # code_out
            pl.BlockSpec((1, 1, 8, 128), lambda i, j: (i, j, 0, 0)),         # jac partials
        ),
        compiler_params=pltpu.CompilerParams(
            dimension_semantics=("parallel", "parallel"),
            vmem_limit_bytes=32 * 1024 * 1024,
        ),
    )(x_nchw, sft_nchw, code_nchw, w_sft, b_sft, w_out, b_out)

    jac = jnp.sum(jac_tiles[:, :, 0, 0], axis=1)
    # Module forward returns (input, code, jac); input passes through unchanged.
    return x_nchw, code_out, jac


def _reference(x_nchw, sft_nchw, code_nchw, w_sft, b_sft, w_out, b_out):
    n, c, h, w = x_nchw.shape
    xf = x_nchw.reshape(n, c, -1).astype(jnp.float32)
    sf = sft_nchw.reshape(n, sft_nchw.shape[1], -1).astype(jnp.float32)
    cf = code_nchw.reshape(n, c, -1).astype(jnp.float32)
    gb = jnp.einsum('nkp,kd->ndp', sf, w_sft) + b_sft[None, :, None]
    gamma, beta = gb[:, :c], gb[:, c:]
    mod = xf * gamma + beta
    cond = jnp.einsum('nkp,kd->ndp', mod, w_out) + b_out[None, :, None]
    loc, raw = cond[:, :c], cond[:, c:]
    scale = CLAMP * (jax.nn.sigmoid(raw) * 2.0 - 1.0)
    out = cf * jnp.exp(scale) + loc
    jac = jnp.sum(scale.reshape(n, -1), axis=1)
    return out.reshape(n, c, h, w), jac


def _run_case(key, n, h, w, max_h_tile=None):
    kx, ks, kc, kw1, kb1, kw2, kb2 = jax.random.split(key, 7)
    x = jax.random.normal(kx, (n, C, h, w), dtype=jnp.float32)
    sft_cond = jax.random.normal(ks, (n, C_SFT, h, w), dtype=jnp.float32)
    # distribution='gaussian': code ~ randn_like(loc); drawn deterministically here.
    code = jax.random.normal(kc, (n, C, h, w), dtype=jnp.float32)

    # Deterministic "conv" parameters (1x1 convs as channel-mixing weights).
    w_sft = 0.1 * jax.random.normal(kw1, (C_SFT, 2 * C), dtype=jnp.float32)
    b_sft = 0.1 * jax.random.normal(kb1, (2 * C,), dtype=jnp.float32)
    w_out = 0.1 * jax.random.normal(kw2, (C, 2 * C), dtype=jnp.float32)
    b_out = 0.1 * jax.random.normal(kb2, (2 * C,), dtype=jnp.float32)

    inp_out, code_out, jac = sft_cond_anf_forward(
        x, sft_cond, code, w_sft, b_sft, w_out, b_out, max_h_tile=max_h_tile)
    jax.block_until_ready((inp_out, code_out, jac))

    ref_code, ref_jac = _reference(x, sft_cond, code, w_sft, b_sft, w_out, b_out)
    assert jnp.allclose(code_out, ref_code, atol=1e-5, rtol=1e-5), "code mismatch"
    assert jnp.allclose(jac, ref_jac, atol=1e-3, rtol=1e-5), "jac mismatch"
    assert jnp.array_equal(inp_out, x), "input passthrough mismatch"


if __name__ == "__main__":
    root = jax.random.PRNGKey(0)
    k1, k2, k3 = jax.random.split(root, 3)
    _run_case(k1, n=2, h=16, w=16)                   # single spatial tile per sample
    _run_case(k2, n=2, h=64, w=64, max_h_tile=16)    # multiple H tiles: jac partial sums
    _run_case(k3, n=1, h=64, w=64)                   # n==1 path: H auto-split for 2 TCs
    print("KERNEL_OK")
</pallas_src>

<mosaic_0001>
module attributes {stable_mosaic.version = 11 : i64} {
  func.func @kernel(%arg0: i32, %arg1: i32, %arg2: memref<1x4x16x16xf32, #tpu.memory_space<vmem>>, %arg3: memref<1x4x16x16xf32, #tpu.memory_space<vmem>>, %arg4: memref<1x4x16x16xf32, #tpu.memory_space<vmem>>, %arg5: memref<4x8xf32, #tpu.memory_space<smem>>, %arg6: memref<8xf32, #tpu.memory_space<smem>>, %arg7: memref<4x8xf32, #tpu.memory_space<smem>>, %arg8: memref<8xf32, #tpu.memory_space<smem>>, %arg9: memref<1x4x16x16xf32, #tpu.memory_space<vmem>>, %arg10: memref<1x1x8x128xf32, #tpu.memory_space<vmem>>) attributes {dimension_semantics = [#tpu.dimension_semantics<parallel>, #tpu.dimension_semantics<parallel>], iteration_bounds = array<i64: 2, 1>, scalar_prefetch = 0 : i64, scratch_operands = 0 : i64, tpu.core_type = #tpu.core_type<tc>, window_params = [{transform_indices = @transform_0, window_bounds = array<i64: 1, 4, 16, 16>}, {transform_indices = @transform_1, window_bounds = array<i64: 1, 4, 16, 16>}, {transform_indices = @transform_2, window_bounds = array<i64: 1, 4, 16, 16>}, {transform_indices = @transform_3, window_bounds = array<i64: 4, 8>}, {transform_indices = @transform_4, window_bounds = array<i64: 8>}, {transform_indices = @transform_5, window_bounds = array<i64: 4, 8>}, {transform_indices = @transform_6, window_bounds = array<i64: 8>}, {transform_indices = @transform_7, window_bounds = array<i64: 1, 4, 16, 16>}, {transform_indices = @transform_8, window_bounds = array<i64: 1, 1, 8, 128>}]} {
    %c0 = arith.constant 0 : index
    %c0_0 = arith.constant 0 : index
    %0 = memref.load %arg5[%c0, %c0_0] : memref<4x8xf32, #tpu.memory_space<smem>>
    %c0_1 = arith.constant 0 : index
    %c1 = arith.constant 1 : index
    %1 = memref.load %arg5[%c0_1, %c1] : memref<4x8xf32, #tpu.memory_space<smem>>
    %c0_2 = arith.constant 0 : index
    %c2 = arith.constant 2 : index
    %2 = memref.load %arg5[%c0_2, %c2] : memref<4x8xf32, #tpu.memory_space<smem>>
    %c0_3 = arith.constant 0 : index
    %c3 = arith.constant 3 : index
    %3 = memref.load %arg5[%c0_3, %c3] : memref<4x8xf32, #tpu.memory_space<smem>>
    %c0_4 = arith.constant 0 : index
    %c4 = arith.constant 4 : index
    %4 = memref.load %arg5[%c0_4, %c4] : memref<4x8xf32, #tpu.memory_space<smem>>
    %c0_5 = arith.constant 0 : index
    %c5 = arith.constant 5 : index
    %5 = memref.load %arg5[%c0_5, %c5] : memref<4x8xf32, #tpu.memory_space<smem>>
    %c0_6 = arith.constant 0 : index
    %c6 = arith.constant 6 : index
    %6 = memref.load %arg5[%c0_6, %c6] : memref<4x8xf32, #tpu.memory_space<smem>>
    %c0_7 = arith.constant 0 : index
    %c7 = arith.constant 7 : index
    %7 = memref.load %arg5[%c0_7, %c7] : memref<4x8xf32, #tpu.memory_space<smem>>
    %c1_8 = arith.constant 1 : index
    %c0_9 = arith.constant 0 : index
    %8 = memref.load %arg5[%c1_8, %c0_9] : memref<4x8xf32, #tpu.memory_space<smem>>
    %c1_10 = arith.constant 1 : index
    %c1_11 = arith.constant 1 : index
    %9 = memref.load %arg5[%c1_10, %c1_11] : memref<4x8xf32, #tpu.memory_space<smem>>
    %c1_12 = arith.constant 1 : index
    %c2_13 = arith.constant 2 : index
    %10 = memref.load %arg5[%c1_12, %c2_13] : memref<4x8xf32, #tpu.memory_space<smem>>
    %c1_14 = arith.constant 1 : index
    %c3_15 = arith.constant 3 : index
    %11 = memref.load %arg5[%c1_14, %c3_15] : memref<4x8xf32, #tpu.memory_space<smem>>
    %c1_16 = arith.constant 1 : index
    %c4_17 = arith.constant 4 : index
    %12 = memref.load %arg5[%c1_16, %c4_17] : memref<4x8xf32, #tpu.memory_space<smem>>
    %c1_18 = arith.constant 1 : index
    %c5_19 = arith.constant 5 : index
    %13 = memref.load %arg5[%c1_18, %c5_19] : memref<4x8xf32, #tpu.memory_space<smem>>
    %c1_20 = arith.constant 1 : index
    %c6_21 = arith.constant 6 : index
    %14 = memref.load %arg5[%c1_20, %c6_21] : memref<4x8xf32, #tpu.memory_space<smem>>
    %c1_22 = arith.constant 1 : index
    %c7_23 = arith.constant 7 : index
    %15 = memref.load %arg5[%c1_22, %c7_23] : memref<4x8xf32, #tpu.memory_space<smem>>
    %c2_24 = arith.constant 2 : index
    %c0_25 = arith.constant 0 : index
    %16 = memref.load %arg5[%c2_24, %c0_25] : memref<4x8xf32, #tpu.memory_space<smem>>
    %c2_26 = arith.constant 2 : index
    %c1_27 = arith.constant 1 : index
    %17 = memref.load %arg5[%c2_26, %c1_27] : memref<4x8xf32, #tpu.memory_space<smem>>
    %c2_28 = arith.constant 2 : index
    %c2_29 = arith.constant 2 : index
    %18 = memref.load %arg5[%c2_28, %c2_29] : memref<4x8xf32, #tpu.memory_space<smem>>
    %c2_30 = arith.constant 2 : index
    %c3_31 = arith.constant 3 : index
    %19 = memref.load %arg5[%c2_30, %c3_31] : memref<4x8xf32, #tpu.memory_space<smem>>
    %c2_32 = arith.constant 2 : index
    %c4_33 = arith.constant 4 : index
    %20 = memref.load %arg5[%c2_32, %c4_33] : memref<4x8xf32, #tpu.memory_space<smem>>
    %c2_34 = arith.constant 2 : index
    %c5_35 = arith.constant 5 : index
    %21 = memref.load %arg5[%c2_34, %c5_35] : memref<4x8xf32, #tpu.memory_space<smem>>
    %c2_36 = arith.constant 2 : index
    %c6_37 = arith.constant 6 : index
    %22 = memref.load %arg5[%c2_36, %c6_37] : memref<4x8xf32, #tpu.memory_space<smem>>
    %c2_38 = arith.constant 2 : index
    %c7_39 = arith.constant 7 : index
    %23 = memref.load %arg5[%c2_38, %c7_39] : memref<4x8xf32, #tpu.memory_space<smem>>
    %c3_40 = arith.constant 3 : index
    %c0_41 = arith.constant 0 : index
    %24 = memref.load %arg5[%c3_40, %c0_41] : memref<4x8xf32, #tpu.memory_space<smem>>
    %c3_42 = arith.constant 3 : index
    %c1_43 = arith.constant 1 : index
    %25 = memref.load %arg5[%c3_42, %c1_43] : memref<4x8xf32, #tpu.memory_space<smem>>
    %c3_44 = arith.constant 3 : index
    %c2_45 = arith.constant 2 : index
    %26 = memref.load %arg5[%c3_44, %c2_45] : memref<4x8xf32, #tpu.memory_space<smem>>
    %c3_46 = arith.constant 3 : index
    %c3_47 = arith.constant 3 : index
    %27 = memref.load %arg5[%c3_46, %c3_47] : memref<4x8xf32, #tpu.memory_space<smem>>
    %c3_48 = arith.constant 3 : index
    %c4_49 = arith.constant 4 : index
    %28 = memref.load %arg5[%c3_48, %c4_49] : memref<4x8xf32, #tpu.memory_space<smem>>
    %c3_50 = arith.constant 3 : index
    %c5_51 = arith.constant 5 : index
    %29 = memref.load %arg5[%c3_50, %c5_51] : memref<4x8xf32, #tpu.memory_space<smem>>
    %c3_52 = arith.constant 3 : index
    %c6_53 = arith.constant 6 : index
    %30 = memref.load %arg5[%c3_52, %c6_53] : memref<4x8xf32, #tpu.memory_space<smem>>
    %c3_54 = arith.constant 3 : index
    %c7_55 = arith.constant 7 : index
    %31 = memref.load %arg5[%c3_54, %c7_55] : memref<4x8xf32, #tpu.memory_space<smem>>
    %c0_56 = arith.constant 0 : index
    %32 = memref.load %arg6[%c0_56] : memref<8xf32, #tpu.memory_space<smem>>
    %c1_57 = arith.constant 1 : index
    %33 = memref.load %arg6[%c1_57] : memref<8xf32, #tpu.memory_space<smem>>
    %c2_58 = arith.constant 2 : index
    %34 = memref.load %arg6[%c2_58] : memref<8xf32, #tpu.memory_space<smem>>
    %c3_59 = arith.constant 3 : index
    %35 = memref.load %arg6[%c3_59] : memref<8xf32, #tpu.memory_space<smem>>
    %c4_60 = arith.constant 4 : index
    %36 = memref.load %arg6[%c4_60] : memref<8xf32, #tpu.memory_space<smem>>
    %c5_61 = arith.constant 5 : index
    %37 = memref.load %arg6[%c5_61] : memref<8xf32, #tpu.memory_space<smem>>
    %c6_62 = arith.constant 6 : index
    %38 = memref.load %arg6[%c6_62] : memref<8xf32, #tpu.memory_space<smem>>
    %c7_63 = arith.constant 7 : index
    %39 = memref.load %arg6[%c7_63] : memref<8xf32, #tpu.memory_space<smem>>
    %c0_64 = arith.constant 0 : index
    %c0_65 = arith.constant 0 : index
    %40 = memref.load %arg7[%c0_64, %c0_65] : memref<4x8xf32, #tpu.memory_space<smem>>
    %c0_66 = arith.constant 0 : index
    %c1_67 = arith.constant 1 : index
    %41 = memref.load %arg7[%c0_66, %c1_67] : memref<4x8xf32, #tpu.memory_space<smem>>
    %c0_68 = arith.constant 0 : index
    %c2_69 = arith.constant 2 : index
    %42 = memref.load %arg7[%c0_68, %c2_69] : memref<4x8xf32, #tpu.memory_space<smem>>
    %c0_70 = arith.constant 0 : index
    %c3_71 = arith.constant 3 : index
    %43 = memref.load %arg7[%c0_70, %c3_71] : memref<4x8xf32, #tpu.memory_space<smem>>
    %c0_72 = arith.constant 0 : index
    %c4_73 = arith.constant 4 : index
    %44 = memref.load %arg7[%c0_72, %c4_73] : memref<4x8xf32, #tpu.memory_space<smem>>
    %c0_74 = arith.constant 0 : index
    %c5_75 = arith.constant 5 : index
    %45 = memref.load %arg7[%c0_74, %c5_75] : memref<4x8xf32, #tpu.memory_space<smem>>
    %c0_76 = arith.constant 0 : index
    %c6_77 = arith.constant 6 : index
    %46 = memref.load %arg7[%c0_76, %c6_77] : memref<4x8xf32, #tpu.memory_space<smem>>
    %c0_78 = arith.constant 0 : index
    %c7_79 = arith.constant 7 : index
    %47 = memref.load %arg7[%c0_78, %c7_79] : memref<4x8xf32, #tpu.memory_space<smem>>
    %c1_80 = arith.constant 1 : index
    %c0_81 = arith.constant 0 : index
    %48 = memref.load %arg7[%c1_80, %c0_81] : memref<4x8xf32, #tpu.memory_space<smem>>
    %c1_82 = arith.constant 1 : index
    %c1_83 = arith.constant 1 : index
    %49 = memref.load %arg7[%c1_82, %c1_83] : memref<4x8xf32, #tpu.memory_space<smem>>
    %c1_84 = arith.constant 1 : index
    %c2_85 = arith.constant 2 : index
    %50 = memref.load %arg7[%c1_84, %c2_85] : memref<4x8xf32, #tpu.memory_space<smem>>
    %c1_86 = arith.constant 1 : index
    %c3_87 = arith.constant 3 : index
    %51 = memref.load %arg7[%c1_86, %c3_87] : memref<4x8xf32, #tpu.memory_space<smem>>
    %c1_88 = arith.constant 1 : index
    %c4_89 = arith.constant 4 : index
    %52 = memref.load %arg7[%c1_88, %c4_89] : memref<4x8xf32, #tpu.memory_space<smem>>
    %c1_90 = arith.constant 1 : index
    %c5_91 = arith.constant 5 : index
    %53 = memref.load %arg7[%c1_90, %c5_91] : memref<4x8xf32, #tpu.memory_space<smem>>
    %c1_92 = arith.constant 1 : index
    %c6_93 = arith.constant 6 : index
    %54 = memref.load %arg7[%c1_92, %c6_93] : memref<4x8xf32, #tpu.memory_space<smem>>
    %c1_94 = arith.constant 1 : index
    %c7_95 = arith.constant 7 : index
    %55 = memref.load %arg7[%c1_94, %c7_95] : memref<4x8xf32, #tpu.memory_space<smem>>
    %c2_96 = arith.constant 2 : index
    %c0_97 = arith.constant 0 : index
    %56 = memref.load %arg7[%c2_96, %c0_97] : memref<4x8xf32, #tpu.memory_space<smem>>
    %c2_98 = arith.constant 2 : index
    %c1_99 = arith.constant 1 : index
    %57 = memref.load %arg7[%c2_98, %c1_99] : memref<4x8xf32, #tpu.memory_space<smem>>
    %c2_100 = arith.constant 2 : index
    %c2_101 = arith.constant 2 : index
    %58 = memref.load %arg7[%c2_100, %c2_101] : memref<4x8xf32, #tpu.memory_space<smem>>
    %c2_102 = arith.constant 2 : index
    %c3_103 = arith.constant 3 : index
    %59 = memref.load %arg7[%c2_102, %c3_103] : memref<4x8xf32, #tpu.memory_space<smem>>
    %c2_104 = arith.constant 2 : index
    %c4_105 = arith.constant 4 : index
    %60 = memref.load %arg7[%c2_104, %c4_105] : memref<4x8xf32, #tpu.memory_space<smem>>
    %c2_106 = arith.constant 2 : index
    %c5_107 = arith.constant 5 : index
    %61 = memref.load %arg7[%c2_106, %c5_107] : memref<4x8xf32, #tpu.memory_space<smem>>
    %c2_108 = arith.constant 2 : index
    %c6_109 = arith.constant 6 : index
    %62 = memref.load %arg7[%c2_108, %c6_109] : memref<4x8xf32, #tpu.memory_space<smem>>
    %c2_110 = arith.constant 2 : index
    %c7_111 = arith.constant 7 : index
    %63 = memref.load %arg7[%c2_110, %c7_111] : memref<4x8xf32, #tpu.memory_space<smem>>
    %c3_112 = arith.constant 3 : index
    %c0_113 = arith.constant 0 : index
    %64 = memref.load %arg7[%c3_112, %c0_113] : memref<4x8xf32, #tpu.memory_space<smem>>
    %c3_114 = arith.constant 3 : index
    %c1_115 = arith.constant 1 : index
    %65 = memref.load %arg7[%c3_114, %c1_115] : memref<4x8xf32, #tpu.memory_space<smem>>
    %c3_116 = arith.constant 3 : index
    %c2_117 = arith.constant 2 : index
    %66 = memref.load %arg7[%c3_116, %c2_117] : memref<4x8xf32, #tpu.memory_space<smem>>
    %c3_118 = arith.constant 3 : index
    %c3_119 = arith.constant 3 : index
    %67 = memref.load %arg7[%c3_118, %c3_119] : memref<4x8xf32, #tpu.memory_space<smem>>
    %c3_120 = arith.constant 3 : index
    %c4_121 = arith.constant 4 : index
    %68 = memref.load %arg7[%c3_120, %c4_121] : memref<4x8xf32, #tpu.memory_space<smem>>
    %c3_122 = arith.constant 3 : index
    %c5_123 = arith.constant 5 : index
    %69 = memref.load %arg7[%c3_122, %c5_123] : memref<4x8xf32, #tpu.memory_space<smem>>
    %c3_124 = arith.constant 3 : index
    %c6_125 = arith.constant 6 : index
    %70 = memref.load %arg7[%c3_124, %c6_125] : memref<4x8xf32, #tpu.memory_space<smem>>
    %c3_126 = arith.constant 3 : index
    %c7_127 = arith.constant 7 : index
    %71 = memref.load %arg7[%c3_126, %c7_127] : memref<4x8xf32, #tpu.memory_space<smem>>
    %c0_128 = arith.constant 0 : index
    %72 = memref.load %arg8[%c0_128] : memref<8xf32, #tpu.memory_space<smem>>
    %c1_129 = arith.constant 1 : index
    %73 = memref.load %arg8[%c1_129] : memref<8xf32, #tpu.memory_space<smem>>
    %c2_130 = arith.constant 2 : index
    %74 = memref.load %arg8[%c2_130] : memref<8xf32, #tpu.memory_space<smem>>
    %c3_131 = arith.constant 3 : index
    %75 = memref.load %arg8[%c3_131] : memref<8xf32, #tpu.memory_space<smem>>
    %c4_132 = arith.constant 4 : index
    %76 = memref.load %arg8[%c4_132] : memref<8xf32, #tpu.memory_space<smem>>
    %c5_133 = arith.constant 5 : index
    %77 = memref.load %arg8[%c5_133] : memref<8xf32, #tpu.memory_space<smem>>
    %c6_134 = arith.constant 6 : index
    %78 = memref.load %arg8[%c6_134] : memref<8xf32, #tpu.memory_space<smem>>
    %c7_135 = arith.constant 7 : index
    %79 = memref.load %arg8[%c7_135] : memref<8xf32, #tpu.memory_space<smem>>
    %c0_136 = arith.constant 0 : index
    %c0_137 = arith.constant 0 : index
    %c0_138 = arith.constant 0 : index
    %c0_139 = arith.constant 0 : index
    %80 = vector.load %arg2[%c0_136, %c0_137, %c0_138, %c0_139] : memref<1x4x16x16xf32, #tpu.memory_space<vmem>>, vector<1x1x16x16xf32>
    %81 = vector.shape_cast %80 : vector<1x1x16x16xf32> to vector<16x16xf32>
    %c0_140 = arith.constant 0 : index
    %c1_141 = arith.constant 1 : index
    %c0_142 = arith.constant 0 : index
    %c0_143 = arith.constant 0 : index
    %82 = vector.load %arg2[%c0_140, %c1_141, %c0_142, %c0_143] : memref<1x4x16x16xf32, #tpu.memory_space<vmem>>, vector<1x1x16x16xf32>
    %83 = vector.shape_cast %82 : vector<1x1x16x16xf32> to vector<16x16xf32>
    %c0_144 = arith.constant 0 : index
    %c2_145 = arith.constant 2 : index
    %c0_146 = arith.constant 0 : index
    %c0_147 = arith.constant 0 : index
    %84 = vector.load %arg2[%c0_144, %c2_145, %c0_146, %c0_147] : memref<1x4x16x16xf32, #tpu.memory_space<vmem>>, vector<1x1x16x16xf32>
    %85 = vector.shape_cast %84 : vector<1x1x16x16xf32> to vector<16x16xf32>
    %c0_148 = arith.constant 0 : index
    %c3_149 = arith.constant 3 : index
    %c0_150 = arith.constant 0 : index
    %c0_151 = arith.constant 0 : index
    %86 = vector.load %arg2[%c0_148, %c3_149, %c0_150, %c0_151] : memref<1x4x16x16xf32, #tpu.memory_space<vmem>>, vector<1x1x16x16xf32>
    %87 = vector.shape_cast %86 : vector<1x1x16x16xf32> to vector<16x16xf32>
    %c0_152 = arith.constant 0 : index
    %c0_153 = arith.constant 0 : index
    %c0_154 = arith.constant 0 : index
    %c0_155 = arith.constant 0 : index
    %88 = vector.load %arg3[%c0_152, %c0_153, %c0_154, %c0_155] : memref<1x4x16x16xf32, #tpu.memory_space<vmem>>, vector<1x1x16x16xf32>
    %89 = vector.shape_cast %88 : vector<1x1x16x16xf32> to vector<16x16xf32>
    %c0_156 = arith.constant 0 : index
    %c1_157 = arith.constant 1 : index
    %c0_158 = arith.constant 0 : index
    %c0_159 = arith.constant 0 : index
    %90 = vector.load %arg3[%c0_156, %c1_157, %c0_158, %c0_159] : memref<1x4x16x16xf32, #tpu.memory_space<vmem>>, vector<1x1x16x16xf32>
    %91 = vector.shape_cast %90 : vector<1x1x16x16xf32> to vector<16x16xf32>
    %c0_160 = arith.constant 0 : index
    %c2_161 = arith.constant 2 : index
    %c0_162 = arith.constant 0 : index
    %c0_163 = arith.constant 0 : index
    %92 = vector.load %arg3[%c0_160, %c2_161, %c0_162, %c0_163] : memref<1x4x16x16xf32, #tpu.memory_space<vmem>>, vector<1x1x16x16xf32>
    %93 = vector.shape_cast %92 : vector<1x1x16x16xf32> to vector<16x16xf32>
    %c0_164 = arith.constant 0 : index
    %c3_165 = arith.constant 3 : index
    %c0_166 = arith.constant 0 : index
    %c0_167 = arith.constant 0 : index
    %94 = vector.load %arg3[%c0_164, %c3_165, %c0_166, %c0_167] : memref<1x4x16x16xf32, #tpu.memory_space<vmem>>, vector<1x1x16x16xf32>
    %95 = vector.shape_cast %94 : vector<1x1x16x16xf32> to vector<16x16xf32>
    %96 = vector.broadcast %0 : f32 to vector<16x16xf32>
    %97 = arith.mulf %89, %96 : vector<16x16xf32>
    %98 = vector.broadcast %32 : f32 to vector<16x16xf32>
    %99 = arith.addf %97, %98 : vector<16x16xf32>
    %100 = vector.broadcast %8 : f32 to vector<16x16xf32>
    %101 = arith.mulf %91, %100 : vector<16x16xf32>
    %102 = arith.addf %99, %101 : vector<16x16xf32>
    %103 = vector.broadcast %16 : f32 to vector<16x16xf32>
    %104 = arith.mulf %93, %103 : vector<16x16xf32>
    %105 = arith.addf %102, %104 : vector<16x16xf32>
    %106 = vector.broadcast %24 : f32 to vector<16x16xf32>
    %107 = arith.mulf %95, %106 : vector<16x16xf32>
    %108 = arith.addf %105, %107 : vector<16x16xf32>
    %109 = vector.broadcast %4 : f32 to vector<16x16xf32>
    %110 = arith.mulf %89, %109 : vector<16x16xf32>
    %111 = vector.broadcast %36 : f32 to vector<16x16xf32>
    %112 = arith.addf %110, %111 : vector<16x16xf32>
    %113 = vector.broadcast %12 : f32 to vector<16x16xf32>
    %114 = arith.mulf %91, %113 : vector<16x16xf32>
    %115 = arith.addf %112, %114 : vector<16x16xf32>
    %116 = vector.broadcast %20 : f32 to vector<16x16xf32>
    %117 = arith.mulf %93, %116 : vector<16x16xf32>
    %118 = arith.addf %115, %117 : vector<16x16xf32>
    %119 = vector.broadcast %28 : f32 to vector<16x16xf32>
    %120 = arith.mulf %95, %119 : vector<16x16xf32>
    %121 = arith.addf %118, %120 : vector<16x16xf32>
    %122 = arith.mulf %81, %108 : vector<16x16xf32>
    %123 = arith.addf %122, %121 : vector<16x16xf32>
    %124 = vector.broadcast %1 : f32 to vector<16x16xf32>
    %125 = arith.mulf %89, %124 : vector<16x16xf32>
    %126 = vector.broadcast %33 : f32 to vector<16x16xf32>
    %127 = arith.addf %125, %126 : vector<16x16xf32>
    %128 = vector.broadcast %9 : f32 to vector<16x16xf32>
    %129 = arith.mulf %91, %128 : vector<16x16xf32>
    %130 = arith.addf %127, %129 : vector<16x16xf32>
    %131 = vector.broadcast %17 : f32 to vector<16x16xf32>
    %132 = arith.mulf %93, %131 : vector<16x16xf32>
    %133 = arith.addf %130, %132 : vector<16x16xf32>
    %134 = vector.broadcast %25 : f32 to vector<16x16xf32>
    %135 = arith.mulf %95, %134 : vector<16x16xf32>
    %136 = arith.addf %133, %135 : vector<16x16xf32>
    %137 = vector.broadcast %5 : f32 to vector<16x16xf32>
    %138 = arith.mulf %89, %137 : vector<16x16xf32>
    %139 = vector.broadcast %37 : f32 to vector<16x16xf32>
    %140 = arith.addf %138, %139 : vector<16x16xf32>
    %141 = vector.broadcast %13 : f32 to vector<16x16xf32>
    %142 = arith.mulf %91, %141 : vector<16x16xf32>
    %143 = arith.addf %140, %142 : vector<16x16xf32>
    %144 = vector.broadcast %21 : f32 to vector<16x16xf32>
    %145 = arith.mulf %93, %144 : vector<16x16xf32>
    %146 = arith.addf %143, %145 : vector<16x16xf32>
    %147 = vector.broadcast %29 : f32 to vector<16x16xf32>
    %148 = arith.mulf %95, %147 : vector<16x16xf32>
    %149 = arith.addf %146, %148 : vector<16x16xf32>
    %150 = arith.mulf %83, %136 : vector<16x16xf32>
    %151 = arith.addf %150, %149 : vector<16x16xf32>
    %152 = vector.broadcast %2 : f32 to vector<16x16xf32>
    %153 = arith.mulf %89, %152 : vector<16x16xf32>
    %154 = vector.broadcast %34 : f32 to vector<16x16xf32>
    %155 = arith.addf %153, %154 : vector<16x16xf32>
    %156 = vector.broadcast %10 : f32 to vector<16x16xf32>
    %157 = arith.mulf %91, %156 : vector<16x16xf32>
    %158 = arith.addf %155, %157 : vector<16x16xf32>
    %159 = vector.broadcast %18 : f32 to vector<16x16xf32>
    %160 = arith.mulf %93, %159 : vector<16x16xf32>
    %161 = arith.addf %158, %160 : vector<16x16xf32>
    %162 = vector.broadcast %26 : f32 to vector<16x16xf32>
    %163 = arith.mulf %95, %162 : vector<16x16xf32>
    %164 = arith.addf %161, %163 : vector<16x16xf32>
    %165 = vector.broadcast %6 : f32 to vector<16x16xf32>
    %166 = arith.mulf %89, %165 : vector<16x16xf32>
    %167 = vector.broadcast %38 : f32 to vector<16x16xf32>
    %168 = arith.addf %166, %167 : vector<16x16xf32>
    %169 = vector.broadcast %14 : f32 to vector<16x16xf32>
    %170 = arith.mulf %91, %169 : vector<16x16xf32>
    %171 = arith.addf %168, %170 : vector<16x16xf32>
    %172 = vector.broadcast %22 : f32 to vector<16x16xf32>
    %173 = arith.mulf %93, %172 : vector<16x16xf32>
    %174 = arith.addf %171, %173 : vector<16x16xf32>
    %175 = vector.broadcast %30 : f32 to vector<16x16xf32>
    %176 = arith.mulf %95, %175 : vector<16x16xf32>
    %177 = arith.addf %174, %176 : vector<16x16xf32>
    %178 = arith.mulf %85, %164 : vector<16x16xf32>
    %179 = arith.addf %178, %177 : vector<16x16xf32>
    %180 = vector.broadcast %3 : f32 to vector<16x16xf32>
    %181 = arith.mulf %89, %180 : vector<16x16xf32>
    %182 = vector.broadcast %35 : f32 to vector<16x16xf32>
    %183 = arith.addf %181, %182 : vector<16x16xf32>
    %184 = vector.broadcast %11 : f32 to vector<16x16xf32>
    %185 = arith.mulf %91, %184 : vector<16x16xf32>
    %186 = arith.addf %183, %185 : vector<16x16xf32>
    %187 = vector.broadcast %19 : f32 to vector<16x16xf32>
    %188 = arith.mulf %93, %187 : vector<16x16xf32>
    %189 = arith.addf %186, %188 : vector<16x16xf32>
    %190 = vector.broadcast %27 : f32 to vector<16x16xf32>
    %191 = arith.mulf %95, %190 : vector<16x16xf32>
    %192 = arith.addf %189, %191 : vector<16x16xf32>
    %193 = vector.broadcast %7 : f32 to vector<16x16xf32>
    %194 = arith.mulf %89, %193 : vector<16x16xf32>
    %195 = vector.broadcast %39 : f32 to vector<16x16xf32>
    %196 = arith.addf %194, %195 : vector<16x16xf32>
    %197 = vector.broadcast %15 : f32 to vector<16x16xf32>
    %198 = arith.mulf %91, %197 : vector<16x16xf32>
    %199 = arith.addf %196, %198 : vector<16x16xf32>
    %200 = vector.broadcast %23 : f32 to vector<16x16xf32>
    %201 = arith.mulf %93, %200 : vector<16x16xf32>
    %202 = arith.addf %199, %201 : vector<16x16xf32>
    %203 = vector.broadcast %31 : f32 to vector<16x16xf32>
    %204 = arith.mulf %95, %203 : vector<16x16xf32>
    %205 = arith.addf %202, %204 : vector<16x16xf32>
    %206 = arith.mulf %87, %192 : vector<16x16xf32>
    %207 = arith.addf %206, %205 : vector<16x16xf32>
    %208 = vector.broadcast %40 : f32 to vector<16x16xf32>
    %209 = arith.mulf %123, %208 : vector<16x16xf32>
    %210 = vector.broadcast %72 : f32 to vector<16x16xf32>
    %211 = arith.addf %209, %210 : vector<16x16xf32>
    %212 = vector.broadcast %48 : f32 to vector<16x16xf32>
    %213 = arith.mulf %151, %212 : vector<16x16xf32>
    %214 = arith.addf %211, %213 : vector<16x16xf32>
    %215 = vector.broadcast %56 : f32 to vector<16x16xf32>
    %216 = arith.mulf %179, %215 : vector<16x16xf32>
    %217 = arith.addf %214, %216 : vector<16x16xf32>
    %218 = vector.broadcast %64 : f32 to vector<16x16xf32>
    %219 = arith.mulf %207, %218 : vector<16x16xf32>
    %220 = arith.addf %217, %219 : vector<16x16xf32>
    %221 = vector.broadcast %44 : f32 to vector<16x16xf32>
    %222 = arith.mulf %123, %221 : vector<16x16xf32>
    %223 = vector.broadcast %76 : f32 to vector<16x16xf32>
    %224 = arith.addf %222, %223 : vector<16x16xf32>
    %225 = vector.broadcast %52 : f32 to vector<16x16xf32>
    %226 = arith.mulf %151, %225 : vector<16x16xf32>
    %227 = arith.addf %224, %226 : vector<16x16xf32>
    %228 = vector.broadcast %60 : f32 to vector<16x16xf32>
    %229 = arith.mulf %179, %228 : vector<16x16xf32>
    %230 = arith.addf %227, %229 : vector<16x16xf32>
    %231 = vector.broadcast %68 : f32 to vector<16x16xf32>
    %232 = arith.mulf %207, %231 : vector<16x16xf32>
    %233 = arith.addf %230, %232 : vector<16x16xf32>
    %cst = arith.constant 5.000000e-01 : f32
    %234 = vector.broadcast %cst : f32 to vector<16x16xf32>
    %235 = arith.mulf %234, %233 : vector<16x16xf32>
    %236 = math.tanh %235 : vector<16x16xf32>
    %cst_168 = arith.constant 1.000000e+00 : f32
    %237 = vector.broadcast %cst_168 : f32 to vector<16x16xf32>
    %238 = arith.mulf %237, %236 : vector<16x16xf32>
    %c0_169 = arith.constant 0 : index
    %c0_170 = arith.constant 0 : index
    %c0_171 = arith.constant 0 : index
    %c0_172 = arith.constant 0 : index
    %239 = vector.load %arg4[%c0_169, %c0_170, %c0_171, %c0_172] : memref<1x4x16x16xf32, #tpu.memory_space<vmem>>, vector<1x1x16x16xf32>
    %240 = vector.shape_cast %239 : vector<1x1x16x16xf32> to vector<16x16xf32>
    %241 = math.exp %238 : vector<16x16xf32>
    %242 = arith.mulf %240, %241 : vector<16x16xf32>
    %243 = arith.addf %242, %220 : vector<16x16xf32>
    %c0_173 = arith.constant 0 : index
    %c0_174 = arith.constant 0 : index
    %c0_175 = arith.constant 0 : index
    %c0_176 = arith.constant 0 : index
    %244 = vector.load %arg9[%c0_173, %c0_174, %c0_175, %c0_176] : memref<1x4x16x16xf32, #tpu.memory_space<vmem>>, vector<1x1x16x16xf32>
    %245 = vector.shape_cast %244 : vector<1x1x16x16xf32> to vector<16x16xf32>
    %246 = vector.shape_cast %243 : vector<16x16xf32> to vector<1x1x16x16xf32>
    tpu.vector_store %arg9[%c0_173, %c0_174, %c0_175, %c0_176], %246 {strides = array<i32>} : memref<1x4x16x16xf32, #tpu.memory_space<vmem>>, vector<1x1x16x16xf32>,
    %247 = vector.broadcast %41 : f32 to vector<16x16xf32>
    %248 = arith.mulf %123, %247 : vector<16x16xf32>
    %249 = vector.broadcast %73 : f32 to vector<16x16xf32>
    %250 = arith.addf %248, %249 : vector<16x16xf32>
    %251 = vector.broadcast %49 : f32 to vector<16x16xf32>
    %252 = arith.mulf %151, %251 : vector<16x16xf32>
    %253 = arith.addf %250, %252 : vector<16x16xf32>
    %254 = vector.broadcast %57 : f32 to vector<16x16xf32>
    %255 = arith.mulf %179, %254 : vector<16x16xf32>
    %256 = arith.addf %253, %255 : vector<16x16xf32>
    %257 = vector.broadcast %65 : f32 to vector<16x16xf32>
    %258 = arith.mulf %207, %257 : vector<16x16xf32>
    %259 = arith.addf %256, %258 : vector<16x16xf32>
    %260 = vector.broadcast %45 : f32 to vector<16x16xf32>
    %261 = arith.mulf %123, %260 : vector<16x16xf32>
    %262 = vector.broadcast %77 : f32 to vector<16x16xf32>
    %263 = arith.addf %261, %262 : vector<16x16xf32>
    %264 = vector.broadcast %53 : f32 to vector<16x16xf32>
    %265 = arith.mulf %151, %264 : vector<16x16xf32>
    %266 = arith.addf %263, %265 : vector<16x16xf32>
    %267 = vector.broadcast %61 : f32 to vector<16x16xf32>
    %268 = arith.mulf %179, %267 : vector<16x16xf32>
    %269 = arith.addf %266, %268 : vector<16x16xf32>
    %270 = vector.broadcast %69 : f32 to vector<16x16xf32>
    %271 = arith.mulf %207, %270 : vector<16x16xf32>
    %272 = arith.addf %269, %271 : vector<16x16xf32>
    %cst_177 = arith.constant 5.000000e-01 : f32
    %273 = vector.broadcast %cst_177 : f32 to vector<16x16xf32>
    %274 = arith.mulf %273, %272 : vector<16x16xf32>
    %275 = math.tanh %274 : vector<16x16xf32>
    %cst_178 = arith.constant 1.000000e+00 : f32
    %276 = vector.broadcast %cst_178 : f32 to vector<16x16xf32>
    %277 = arith.mulf %276, %275 : vector<16x16xf32>
    %c0_179 = arith.constant 0 : index
    %c1_180 = arith.constant 1 : index
    %c0_181 = arith.constant 0 : index
    %c0_182 = arith.constant 0 : index
    %278 = vector.load %arg4[%c0_179, %c1_180, %c0_181, %c0_182] : memref<1x4x16x16xf32, #tpu.memory_space<vmem>>, vector<1x1x16x16xf32>
    %279 = vector.shape_cast %278 : vector<1x1x16x16xf32> to vector<16x16xf32>
    %280 = math.exp %277 : vector<16x16xf32>
    %281 = arith.mulf %279, %280 : vector<16x16xf32>
    %282 = arith.addf %281, %259 : vector<16x16xf32>
    %c0_183 = arith.constant 0 : index
    %c1_184 = arith.constant 1 : index
    %c0_185 = arith.constant 0 : index
    %c0_186 = arith.constant 0 : index
    %283 = vector.load %arg9[%c0_183, %c1_184, %c0_185, %c0_186] : memref<1x4x16x16xf32, #tpu.memory_space<vmem>>, vector<1x1x16x16xf32>
    %284 = vector.shape_cast %283 : vector<1x1x16x16xf32> to vector<16x16xf32>
    %285 = vector.shape_cast %282 : vector<16x16xf32> to vector<1x1x16x16xf32>
    tpu.vector_store %arg9[%c0_183, %c1_184, %c0_185, %c0_186], %285 {strides = array<i32>} : memref<1x4x16x16xf32, #tpu.memory_space<vmem>>, vector<1x1x16x16xf32>,
    %286 = arith.addf %238, %277 : vector<16x16xf32>
    %287 = vector.broadcast %42 : f32 to vector<16x16xf32>
    %288 = arith.mulf %123, %287 : vector<16x16xf32>
    %289 = vector.broadcast %74 : f32 to vector<16x16xf32>
    %290 = arith.addf %288, %289 : vector<16x16xf32>
    %291 = vector.broadcast %50 : f32 to vector<16x16xf32>
    %292 = arith.mulf %151, %291 : vector<16x16xf32>
    %293 = arith.addf %290, %292 : vector<16x16xf32>
    %294 = vector.broadcast %58 : f32 to vector<16x16xf32>
    %295 = arith.mulf %179, %294 : vector<16x16xf32>
    %296 = arith.addf %293, %295 : vector<16x16xf32>
    %297 = vector.broadcast %66 : f32 to vector<16x16xf32>
    %298 = arith.mulf %207, %297 : vector<16x16xf32>
    %299 = arith.addf %296, %298 : vector<16x16xf32>
    %300 = vector.broadcast %46 : f32 to vector<16x16xf32>
    %301 = arith.mulf %123, %300 : vector<16x16xf32>
    %302 = vector.broadcast %78 : f32 to vector<16x16xf32>
    %303 = arith.addf %301, %302 : vector<16x16xf32>
    %304 = vector.broadcast %54 : f32 to vector<16x16xf32>
    %305 = arith.mulf %151, %304 : vector<16x16xf32>
    %306 = arith.addf %303, %305 : vector<16x16xf32>
    %307 = vector.broadcast %62 : f32 to vector<16x16xf32>
    %308 = arith.mulf %179, %307 : vector<16x16xf32>
    %309 = arith.addf %306, %308 : vector<16x16xf32>
    %310 = vector.broadcast %70 : f32 to vector<16x16xf32>
    %311 = arith.mulf %207, %310 : vector<16x16xf32>
    %312 = arith.addf %309, %311 : vector<16x16xf32>
    %cst_187 = arith.constant 5.000000e-01 : f32
    %313 = vector.broadcast %cst_187 : f32 to vector<16x16xf32>
    %314 = arith.mulf %313, %312 : vector<16x16xf32>
    %315 = math.tanh %314 : vector<16x16xf32>
    %cst_188 = arith.constant 1.000000e+00 : f32
    %316 = vector.broadcast %cst_188 : f32 to vector<16x16xf32>
    %317 = arith.mulf %316, %315 : vector<16x16xf32>
    %c0_189 = arith.constant 0 : index
    %c2_190 = arith.constant 2 : index
    %c0_191 = arith.constant 0 : index
    %c0_192 = arith.constant 0 : index
    %318 = vector.load %arg4[%c0_189, %c2_190, %c0_191, %c0_192] : memref<1x4x16x16xf32, #tpu.memory_space<vmem>>, vector<1x1x16x16xf32>
    %319 = vector.shape_cast %318 : vector<1x1x16x16xf32> to vector<16x16xf32>
    %320 = math.exp %317 : vector<16x16xf32>
    %321 = arith.mulf %319, %320 : vector<16x16xf32>
    %322 = arith.addf %321, %299 : vector<16x16xf32>
    %c0_193 = arith.constant 0 : index
    %c2_194 = arith.constant 2 : index
    %c0_195 = arith.constant 0 : index
    %c0_196 = arith.constant 0 : index
    %323 = vector.load %arg9[%c0_193, %c2_194, %c0_195, %c0_196] : memref<1x4x16x16xf32, #tpu.memory_space<vmem>>, vector<1x1x16x16xf32>
    %324 = vector.shape_cast %323 : vector<1x1x16x16xf32> to vector<16x16xf32>
    %325 = vector.shape_cast %322 : vector<16x16xf32> to vector<1x1x16x16xf32>
    tpu.vector_store %arg9[%c0_193, %c2_194, %c0_195, %c0_196], %325 {strides = array<i32>} : memref<1x4x16x16xf32, #tpu.memory_space<vmem>>, vector<1x1x16x16xf32>,
    %326 = arith.addf %286, %317 : vector<16x16xf32>
    %327 = vector.broadcast %43 : f32 to vector<16x16xf32>
    %328 = arith.mulf %123, %327 : vector<16x16xf32>
    %329 = vector.broadcast %75 : f32 to vector<16x16xf32>
    %330 = arith.addf %328, %329 : vector<16x16xf32>
    %331 = vector.broadcast %51 : f32 to vector<16x16xf32>
    %332 = arith.mulf %151, %331 : vector<16x16xf32>
    %333 = arith.addf %330, %332 : vector<16x16xf32>
    %334 = vector.broadcast %59 : f32 to vector<16x16xf32>
    %335 = arith.mulf %179, %334 : vector<16x16xf32>
    %336 = arith.addf %333, %335 : vector<16x16xf32>
    %337 = vector.broadcast %67 : f32 to vector<16x16xf32>
    %338 = arith.mulf %207, %337 : vector<16x16xf32>
    %339 = arith.addf %336, %338 : vector<16x16xf32>
    %340 = vector.broadcast %47 : f32 to vector<16x16xf32>
    %341 = arith.mulf %123, %340 : vector<16x16xf32>
    %342 = vector.broadcast %79 : f32 to vector<16x16xf32>
    %343 = arith.addf %341, %342 : vector<16x16xf32>
    %344 = vector.broadcast %55 : f32 to vector<16x16xf32>
    %345 = arith.mulf %151, %344 : vector<16x16xf32>
    %346 = arith.addf %343, %345 : vector<16x16xf32>
    %347 = vector.broadcast %63 : f32 to vector<16x16xf32>
    %348 = arith.mulf %179, %347 : vector<16x16xf32>
    %349 = arith.addf %346, %348 : vector<16x16xf32>
    %350 = vector.broadcast %71 : f32 to vector<16x16xf32>
    %351 = arith.mulf %207, %350 : vector<16x16xf32>
    %352 = arith.addf %349, %351 : vector<16x16xf32>
    %cst_197 = arith.constant 5.000000e-01 : f32
    %353 = vector.broadcast %cst_197 : f32 to vector<16x16xf32>
    %354 = arith.mulf %353, %352 : vector<16x16xf32>
    %355 = math.tanh %354 : vector<16x16xf32>
    %cst_198 = arith.constant 1.000000e+00 : f32
    %356 = vector.broadcast %cst_198 : f32 to vector<16x16xf32>
    %357 = arith.mulf %356, %355 : vector<16x16xf32>
    %c0_199 = arith.constant 0 : index
    %c3_200 = arith.constant 3 : index
    %c0_201 = arith.constant 0 : index
    %c0_202 = arith.constant 0 : index
    %358 = vector.load %arg4[%c0_199, %c3_200, %c0_201, %c0_202] : memref<1x4x16x16xf32, #tpu.memory_space<vmem>>, vector<1x1x16x16xf32>
    %359 = vector.shape_cast %358 : vector<1x1x16x16xf32> to vector<16x16xf32>
    %360 = math.exp %357 : vector<16x16xf32>
    %361 = arith.mulf %359, %360 : vector<16x16xf32>
    %362 = arith.addf %361, %339 : vector<16x16xf32>
    %c0_203 = arith.constant 0 : index
    %c3_204 = arith.constant 3 : index
    %c0_205 = arith.constant 0 : index
    %c0_206 = arith.constant 0 : index
    %363 = vector.load %arg9[%c0_203, %c3_204, %c0_205, %c0_206] : memref<1x4x16x16xf32, #tpu.memory_space<vmem>>, vector<1x1x16x16xf32>
    %364 = vector.shape_cast %363 : vector<1x1x16x16xf32> to vector<16x16xf32>
    %365 = vector.shape_cast %362 : vector<16x16xf32> to vector<1x1x16x16xf32>
    tpu.vector_store %arg9[%c0_203, %c3_204, %c0_205, %c0_206], %365 {strides = array<i32>} : memref<1x4x16x16xf32, #tpu.memory_space<vmem>>, vector<1x1x16x16xf32>,
    %366 = arith.addf %326, %357 : vector<16x16xf32>
    %367 = vector.shape_cast %366 : vector<16x16xf32> to vector<1x16x16xf32>
    %cst_207 = arith.constant dense<0.000000e+00> : vector<1xf32>
    %368 = vector.multi_reduction <add>, %367, %cst_207 [1, 2] : vector<1x16x16xf32> to vector<1xf32>
    %369 = vector.shape_cast %368 : vector<1xf32> to vector<1x1x1xf32>
    %370 = vector.extract %369[0, 0, 0] : f32 from vector<1x1x1xf32>
    %371 = vector.broadcast %370 : f32 to vector<8x128xf32>
    %c0_208 = arith.constant 0 : index
    %c0_209 = arith.constant 0 : index
    %c0_210 = arith.constant 0 : index
    %c0_211 = arith.constant 0 : index
    %372 = vector.load %arg10[%c0_208, %c0_209, %c0_210, %c0_211] : memref<1x1x8x128xf32, #tpu.memory_space<vmem>>, vector<1x1x8x128xf32>
    %373 = vector.shape_cast %372 : vector<1x1x8x128xf32> to vector<8x128xf32>
    %374 = vector.shape_cast %371 : vector<8x128xf32> to vector<1x1x8x128xf32>
    tpu.vector_store %arg10[%c0_208, %c0_209, %c0_210, %c0_211], %374 {strides = array<i32>} : memref<1x1x8x128xf32, #tpu.memory_space<vmem>>, vector<1x1x8x128xf32>,
    return
  }
  func.func @transform_0(%arg0: i32, %arg1: i32) -> (i32, i32, i32, i32) {
    %c0_i32 = arith.constant 0 : i32
    %c0_i32_0 = arith.constant 0 : i32
    %c0_i32_1 = arith.constant 0 : i32
    return %arg0, %c0_i32, %arg1, %c0_i32_0 : i32, i32, i32, i32
  }
  func.func @transform_1(%arg0: i32, %arg1: i32) -> (i32, i32, i32, i32) {
    %c0_i32 = arith.constant 0 : i32
    %c0_i32_0 = arith.constant 0 : i32
    %c0_i32_1 = arith.constant 0 : i32
    return %arg0, %c0_i32, %arg1, %c0_i32_0 : i32, i32, i32, i32
  }
  func.func @transform_2(%arg0: i32, %arg1: i32) -> (i32, i32, i32, i32) {
    %c0_i32 = arith.constant 0 : i32
    %c0_i32_0 = arith.constant 0 : i32
    %c0_i32_1 = arith.constant 0 : i32
    return %arg0, %c0_i32, %arg1, %c0_i32_0 : i32, i32, i32, i32
  }
  func.func @transform_3(%arg0: i32, %arg1: i32) -> (i32, i32) {
    %c0_i32 = arith.constant 0 : i32
    %c0_i32_0 = arith.constant 0 : i32
    %c0_i32_1 = arith.constant 0 : i32
    return %c0_i32, %c0_i32_0 : i32, i32
  }
  func.func @transform_4(%arg0: i32, %arg1: i32) -> i32 {
    %c0_i32 = arith.constant 0 : i32
    %c0_i32_0 = arith.constant 0 : i32
    return %c0_i32 : i32
  }
  func.func @transform_5(%arg0: i32, %arg1: i32) -> (i32, i32) {
    %c0_i32 = arith.constant 0 : i32
    %c0_i32_0 = arith.constant 0 : i32
    %c0_i32_1 = arith.constant 0 : i32
    return %c0_i32, %c0_i32_0 : i32, i32
  }
  func.func @transform_6(%arg0: i32, %arg1: i32) -> i32 {
    %c0_i32 = arith.constant 0 : i32
    %c0_i32_0 = arith.constant 0 : i32
    return %c0_i32 : i32
  }
  func.func @transform_7(%arg0: i32, %arg1: i32) -> (i32, i32, i32, i32) {
    %c0_i32 = arith.constant 0 : i32
    %c0_i32_0 = arith.constant 0 : i32
    %c0_i32_1 = arith.constant 0 : i32
    return %arg0, %c0_i32, %arg1, %c0_i32_0 : i32, i32, i32, i32
  }
  func.func @transform_8(%arg0: i32, %arg1: i32) -> (i32, i32, i32, i32) {
    %c0_i32 = arith.constant 0 : i32
    %c0_i32_0 = arith.constant 0 : i32
    %c0_i32_1 = arith.constant 0 : i32
    return %arg0, %arg1, %c0_i32, %c0_i32_0 : i32, i32, i32, i32
  }
}

</mosaic_0001>

<llo_original>
// kernel: tpu_custom_call.1
$region0: #{tpu_custom_call.1}
  #allocation0 [shape = 'u32[]', space=smem, size = 0x4, offset = 0x4, fixed_abs, tag = 'smem constant byte address 0x4 - core index']
  #allocation1 [shape = 'u32[144,128]{1,0:T(1,128)}', space=vmem, size = 0x12000, scoped, tag = 'internal scratch']
  %s0 = inlined_call_operand.hbm [shape: f32[2,4,16,16], index: 0, kind: input, shape index: {}]
  %s1 = inlined_call_operand.hbm [shape: f32[2,4,16,16], index: 1, kind: input, shape index: {}]
  %s2 = inlined_call_operand.hbm [shape: f32[2,4,16,16], index: 2, kind: input, shape index: {}]
  %s3 = inlined_call_operand.vmem [shape: f32[4,8], index: 3, kind: input, shape index: {}]
  %s4 = inlined_call_operand.vmem [shape: f32[8], index: 4, kind: input, shape index: {}]
  %s5 = inlined_call_operand.vmem [shape: f32[4,8], index: 5, kind: input, shape index: {}]
  %s6 = inlined_call_operand.vmem [shape: f32[8], index: 6, kind: input, shape index: {}]
  %s7 = inlined_call_operand.hbm [shape: f32[2,4,16,16], index: 7, kind: output, shape index: {0}]
  %s8 = inlined_call_operand.hbm [shape: f32[2,1,8,128], index: 8, kind: output, shape index: {1}]
  %9 = xla_tuple %s7, %s8
  %s10 = sld [smem:[#allocation0]]
  $region97: #{tpu_custom_call.1} parent=0
    _
  %s12 = ssub.s32 1, %s10
  %s13 = scalar_select 0, %s12, %s10
  $region1: #{tpu_custom_call.1} parent=0
    #allocation2 [shape = 'u8[65536]{0}', space=vmem, size = 0x10000, scoped, tag = 'input window, operand 0']
    #allocation3 [shape = 's32[2]{0}', space=sflag, size = 0x8, scoped, tag = 'scoped memory for tpu_custom_call.1']
    #allocation4 [shape = 's32[2]{0}', space=sflag, size = 0x8, scoped, tag = 'scoped memory for tpu_custom_call.1']
    #allocation5 [shape = 's32[2]{0}', space=sflag, size = 0x8, scoped, tag = 'scoped memory for tpu_custom_call.1']
    #allocation6 [shape = 'u8[65536]{0}', space=vmem, size = 0x10000, scoped, tag = 'input window, operand 1']
    #allocation7 [shape = 's32[2]{0}', space=sflag, size = 0x8, scoped, tag = 'scoped memory for tpu_custom_call.1']
    #allocation8 [shape = 'u8[65536]{0}', space=vmem, size = 0x10000, scoped, tag = 'input window, operand 2']
    #allocation9 [shape = 'u8[2048]{0}', space=smem, size = 0x800, scoped, tag = 'input window, operand 3, single buffered']
    #allocation10 [shape = 'u8[512]{0}', space=smem, size = 0x200, scoped, tag = 'input window, operand 4, single buffered']
    #allocation11 [shape = 's32[1]{0}', space=sflag, size = 0x4, scoped, tag = 'scoped memory for tpu_custom_call.1']
    #allocation12 [shape = 'u8[2048]{0}', space=smem, size = 0x800, scoped, tag = 'input window, operand 5, single buffered']
    #allocation13 [shape = 'u8[512]{0}', space=smem, size = 0x200, scoped, tag = 'input window, operand 6, single buffered']
    #allocation14 [shape = 's32[1]{0}', space=sflag, size = 0x4, scoped, tag = 'scoped memory for tpu_custom_call.1']
    #allocation15 [shape = 'u8[65536]{0}', space=vmem, size = 0x10000, scoped, tag = 'output window, operand 0']
    #allocation16 [shape = 'u8[8192]{0}', space=vmem, size = 0x2000, scoped, tag = 'output window, operand 1']
    #allocation17 [shape = 's32[2]{0}', space=sflag, size = 0x8, scoped, tag = 'scoped memory for tpu_custom_call.1']
    %14 = vsyncpa [#allocation3], 0
    %s15 = scalar_lea.sflag [#allocation3], 1
    %16 = vsyncpa %s15, 0
    %17 = vsyncpa [#allocation7], 0
    %s18 = scalar_lea.sflag [#allocation7], 1
    %19 = vsyncpa %s18, 0
    %20 = vsyncpa [#allocation5], 0
    %21 = vsyncpa [#allocation11], 0
    %22 = vsyncpa [#allocation14], 0
    %23 = vsyncpa [#allocation4], 0
    %s24 = scalar_lea.sflag [#allocation4], 1
    %25 = vsyncpa %s24, 0
    %26 = vsyncpa [#allocation17], 0
    %s27 = scalar_lea.sflag [#allocation17], 1
    %28 = vsyncpa %s27, 0
    loop: start=0, step=1, limit=4
    $region2: #{tpu_custom_call.1} parent=1 // loop_pre_header
      _
    $region3: #{tpu_custom_call.1} parent=1 // loop_header
      %s30 = sphi 0, %s34
      %p31 = scmp.ge.s32.totalorder %s30, 4
      %s37 = sphi 0, %s49
      %s38 = sphi 0, %s45
      %s39 = sphi 0, %s37
      %s40 = sphi 0, %s38
      %s41 = sphi 0, %s39
      %s42 = sphi 0, %s40
      %s54 = sphi 0, %s56
      %s57 = sphi 0, %s54
      %s58 = sphi 0, %s57
      %s74 = sphi 0, %s58
      %s82 = sphi 0, %s84
      %s85 = sphi 0, %s82
      %s86 = sphi 0, %s85
      %s102 = sphi 0, %s86
      %s110 = sphi 0, %s112
      %s113 = sphi 0, %s110
      %s114 = sphi 0, %s113
      %s130 = sphi 0, %s114
      %s134 = sphi 0, %s134
      %s136 = sphi 0, %s134
      %s137 = sphi 0, %s136
      %s151 = sphi 0, %s137
      %s155 = sphi 0, %s155
      %s157 = sphi 0, %s155
      %s158 = sphi 0, %s157
      %s172 = sphi 0, %s158
      %s176 = sphi 0, %s176
      %s178 = sphi 0, %s176
      %s179 = sphi 0, %s178
      %s193 = sphi 0, %s179
      %s197 = sphi 0, %s197
      %s199 = sphi 0, %s197
      %s200 = sphi 0, %s199
      %s214 = sphi 0, %s200
      %s222 = sphi 0, %s224
      %s225 = sphi 0, %s222
      %s226 = sphi 0, %s225
      %s242 = sphi 0, %s226
      %s250 = sphi 0, %s252
      %s253 = sphi 0, %s250
      %s254 = sphi 0, %s253
      %s270 = sphi 0, %s254
    $region4: #{tpu_custom_call.1} parent=1 // loop_header_branch
      %33 = sbr.rel (%p31) target = $region8
    $region5: #{tpu_custom_call.1} parent=1 // loop_body
      %s35 = ssub.s32 %s30, 1
      %s36 = ssub.s32 %s30, 2
      %s43 = sadd.s32 1, %s38
      %p44 = scmp.ge.s32.totalorder %s43, 1
      %s45 = scalar_select %p44, 0, %s43
      %s46 = sadd.s32 1, %s37
      %s47 = scalar_select %p44, %s46, %s37
      %p48 = scmp.ge.s32.totalorder %s47, 2
      %s49 = scalar_select %p48, 0, %s47
      %s50 = ssub.s32 %s37, %s49
      %s51 = ssub.s32 %s38, %s45
      %s52 = sor.u32 %s50, %s51
      %p53 = scmp.eq.s32.totalorder %s52, 0
      %s55 = sadd.s32 %s54, 1
      %s56 = scalar_select %p53, %s54, %s55
      %p59 = pneg %p53
      %p60 = scmp.eq.s32.totalorder %s30, 1
      %p61 = por %p59, %p60
      %p62 = scmp.ne.s32.totalorder %s54, %s57
      %p63 = scmp.eq.s32.totalorder %s30, 0
      %p64 = por %p62, %p63
      %p65 = scmp.ne.s32.totalorder %s54, %s57
      %p66 = scmp.eq.s32.totalorder %s35, 1
      %p67 = por %p65, %p66
      %p68 = scmp.ne.s32.totalorder %s57, %s58
      %p69 = scmp.eq.s32.totalorder %s35, 0
      %p70 = por %p68, %p69
      %p71 = scmp.ne.s32.totalorder %s57, %s58
      %p72 = scmp.eq.s32.totalorder %s36, 1
      %p73 = por %p71, %p72
      %p75 = scmp.ne.s32.totalorder %s58, %s74
      %p76 = scmp.eq.s32.totalorder %s36, 0
      %p77 = por %p75, %p76
      %s78 = ssub.s32 %s37, %s49
      %s79 = ssub.s32 %s38, %s45
      %s80 = sor.u32 %s78, %s79
      %p81 = scmp.eq.s32.totalorder %s80, 0
      %s83 = sadd.s32 %s82, 1
      %s84 = scalar_select %p81, %s82, %s83
      %p87 = pneg %p81
      %p88 = scmp.eq.s32.totalorder %s30, 1
      %p89 = por %p87, %p88
      %p90 = scmp.ne.s32.totalorder %s82, %s85
      %p91 = scmp.eq.s32.totalorder %s30, 0
      %p92 = por %p90, %p91
      %p93 = scmp.ne.s32.totalorder %s82, %s85
      %p94 = scmp.eq.s32.totalorder %s35, 1
      %p95 = por %p93, %p94
      %p96 = scmp.ne.s32.totalorder %s85, %s86
      %p97 = scmp.eq.s32.totalorder %s35, 0
      %p98 = por %p96, %p97
      %p99 = scmp.ne.s32.totalorder %s85, %s86
      %p100 = scmp.eq.s32.totalorder %s36, 1
      %p101 = por %p99, %p100
      %p103 = scmp.ne.s32.totalorder %s86, %s102
      %p104 = scmp.eq.s32.totalorder %s36, 0
      %p105 = por %p103, %p104
      %s106 = ssub.s32 %s37, %s49
      %s107 = ssub.s32 %s38, %s45
      %s108 = sor.u32 %s106, %s107
      %p109 = scmp.eq.s32.totalorder %s108, 0
      %s111 = sadd.s32 %s110, 1
      %s112 = scalar_select %p109, %s110, %s111
      %p115 = pneg %p109
      %p116 = scmp.eq.s32.totalorder %s30, 1
      %p117 = por %p115, %p116
      %p118 = scmp.ne.s32.totalorder %s110, %s113
      %p119 = scmp.eq.s32.totalorder %s30, 0
      %p120 = por %p118, %p119
      %p121 = scmp.ne.s32.totalorder %s110, %s113
      %p122 = scmp.eq.s32.totalorder %s35, 1
      %p123 = por %p121, %p122
      %p124 = scmp.ne.s32.totalorder %s113, %s114
      %p125 = scmp.eq.s32.totalorder %s35, 0
      %p126 = por %p124, %p125
      %p127 = scmp.ne.s32.totalorder %s113, %s114
      %p128 = scmp.eq.s32.totalorder %s36, 1
      %p129 = por %p127, %p128
      %p131 = scmp.ne.s32.totalorder %s114, %s130
      %p132 = scmp.eq.s32.totalorder %s36, 0
      %p133 = por %p131, %p132
      %s135 = sadd.s32 %s134, 1
      %p138 = scmp.eq.s32.totalorder %s30, 1
      %p139 = scmp.ne.s32.totalorder %s134, %s136
      %p140 = scmp.eq.s32.totalorder %s30, 0
      %p141 = por %p139, %p140
      %p142 = scmp.ne.s32.totalorder %s134, %s136
      %p143 = scmp.eq.s32.totalorder %s35, 1
      %p144 = por %p142, %p143
      %p145 = scmp.ne.s32.totalorder %s136, %s137
      %p146 = scmp.eq.s32.totalorder %s35, 0
      %p147 = por %p145, %p146
      %p148 = scmp.ne.s32.totalorder %s136, %s137
      %p149 = scmp.eq.s32.totalorder %s36, 1
      %p150 = por %p148, %p149
      %p152 = scmp.ne.s32.totalorder %s137, %s151
      %p153 = scmp.eq.s32.totalorder %s36, 0
      %p154 = por %p152, %p153
      %s156 = sadd.s32 %s155, 1
      %p159 = scmp.eq.s32.totalorder %s30, 1
      %p160 = scmp.ne.s32.totalorder %s155, %s157
      %p161 = scmp.eq.s32.totalorder %s30, 0
      %p162 = por %p160, %p161
      %p163 = scmp.ne.s32.totalorder %s155, %s157
      %p164 = scmp.eq.s32.totalorder %s35, 1
      %p165 = por %p163, %p164
      %p166 = scmp.ne.s32.totalorder %s157, %s158
      %p167 = scmp.eq.s32.totalorder %s35, 0
      %p168 = por %p166, %p167
      %p169 = scmp.ne.s32.totalorder %s157, %s158
      %p170 = scmp.eq.s32.totalorder %s36, 1
      %p171 = por %p169, %p170
      %p173 = scmp.ne.s32.totalorder %s158, %s172
      %p174 = scmp.eq.s32.totalorder %s36, 0
      %p175 = por %p173, %p174
      %s177 = sadd.s32 %s176, 1
      %p180 = scmp.eq.s32.totalorder %s30, 1
      %p181 = scmp.ne.s32.totalorder %s176, %s178
      %p182 = scmp.eq.s32.totalorder %s30, 0
      %p183 = por %p181, %p182
      %p184 = scmp.ne.s32.totalorder %s176, %s178
      %p185 = scmp.eq.s32.totalorder %s35, 1
      %p186 = por %p184, %p185
      %p187 = scmp.ne.s32.totalorder %s178, %s179
      %p188 = scmp.eq.s32.totalorder %s35, 0
      %p189 = por %p187, %p188
      %p190 = scmp.ne.s32.totalorder %s178, %s179
      %p191 = scmp.eq.s32.totalorder %s36, 1
      %p192 = por %p190, %p191
      %p194 = scmp.ne.s32.totalorder %s179, %s193
      %p195 = scmp.eq.s32.totalorder %s36, 0
      %p196 = por %p194, %p195
      %s198 = sadd.s32 %s197, 1
      %p201 = scmp.eq.s32.totalorder %s30, 1
      %p202 = scmp.ne.s32.totalorder %s197, %s199
      %p203 = scmp.eq.s32.totalorder %s30, 0
      %p204 = por %p202, %p203
      %p205 = scmp.ne.s32.totalorder %s197, %s199
      %p206 = scmp.eq.s32.totalorder %s35, 1
      %p207 = por %p205, %p206
      %p208 = scmp.ne.s32.totalorder %s199, %s200
      %p209 = scmp.eq.s32.totalorder %s35, 0
      %p210 = por %p208, %p209
      %p211 = scmp.ne.s32.totalorder %s199, %s200
      %p212 = scmp.eq.s32.totalorder %s36, 1
      %p213 = por %p211, %p212
      %p215 = scmp.ne.s32.totalorder %s200, %s214
      %p216 = scmp.eq.s32.totalorder %s36, 0
      %p217 = por %p215, %p216
      %s218 = ssub.s32 %s37, %s49
      %s219 = ssub.s32 %s38, %s45
      %s220 = sor.u32 %s218, %s219
      %p221 = scmp.eq.s32.totalorder %s220, 0
      %s223 = sadd.s32 %s222, 1
      %s224 = scalar_select %p221, %s222, %s223
      %p227 = pneg %p221
      %p228 = scmp.eq.s32.totalorder %s30, 1
      %p229 = por %p227, %p228
      %p230 = scmp.ne.s32.totalorder %s222, %s225
      %p231 = scmp.eq.s32.totalorder %s30, 0
      %p232 = por %p230, %p231
      %p233 = scmp.ne.s32.totalorder %s222, %s225
      %p234 = scmp.eq.s32.totalorder %s35, 1
      %p235 = por %p233, %p234
      %p236 = scmp.ne.s32.totalorder %s225, %s226
      %p237 = scmp.eq.s32.totalorder %s35, 0
      %p238 = por %p236, %p237
      %p239 = scmp.ne.s32.totalorder %s225, %s226
      %p240 = scmp.eq.s32.totalorder %s36, 1
      %p241 = por %p239, %p240
      %p243 = scmp.ne.s32.totalorder %s226, %s242
      %p244 = scmp.eq.s32.totalorder %s36, 0
      %p245 = por %p243, %p244
      %s246 = ssub.s32 %s37, %s49
      %s247 = ssub.s32 %s38, %s45
      %s248 = sor.u32 %s246, %s247
      %p249 = scmp.eq.s32.totalorder %s248, 0
      %s251 = sadd.s32 %s250, 1
      %s252 = scalar_select %p249, %s250, %s251
      %p255 = pneg %p249
      %p256 = scmp.eq.s32.totalorder %s30, 1
      %p257 = por %p255, %p256
      %p258 = scmp.ne.s32.totalorder %s250, %s253
      %p259 = scmp.eq.s32.totalorder %s30, 0
      %p260 = por %p258, %p259
      %p261 = scmp.ne.s32.totalorder %s250, %s253
      %p262 = scmp.eq.s32.totalorder %s35, 1
      %p263 = por %p261, %p262
      %p264 = scmp.ne.s32.totalorder %s253, %s254
      %p265 = scmp.eq.s32.totalorder %s35, 0
      %p266 = por %p264, %p265
      %p267 = scmp.ne.s32.totalorder %s253, %s254
      %p268 = scmp.eq.s32.totalorder %s36, 1
      %p269 = por %p267, %p268
      %p271 = scmp.ne.s32.totalorder %s254, %s270
      %p272 = scmp.eq.s32.totalorder %s36, 0
      %p273 = por %p271, %p272
      %p274 = scmp.le.s32.totalorder 1, %s30
      %p275 = scmp.lt.s32.totalorder %s30, 3
      %p276 = pnand %p274, %p275
      %p277 = pneg %p276
      // Predicated region
      $region9: #{tpu_custom_call.1} parent=5 // pred_check
        _
      $region10: #{tpu_custom_call.1} parent=5 // pred_check_branch
        %279 = sbr.rel (%p276) target = $region12
      $region11: #{tpu_custom_call.1} parent=5 // pred_region
        %s280 = ssub.s32 %s30, 1
        // Predicated region
        $region13: #{tpu_custom_call.1} parent=11 // pred_check
          %p281 = pneg %p147
        $region14: #{tpu_custom_call.1} parent=11 // pred_check_branch
          %283 = sbr.rel (%p281) target = $region16
        $region15: #{tpu_custom_call.1} parent=11 // pred_region
          %s285 = ssub.s32 64, 64
          %286 = vsyncadd [#allocation5], %s285
          %s288 = sshll.u32 %s3, 4
          %s289 = int_to_ptr.vmem [resolvable:$true] %s288
          %291 = dma.vmem_to_smem %s289, 64, [#allocation9], [#allocation5]
        $region16: #{tpu_custom_call.1} parent=11 // pred_fallthru
          _
        // Predicated region
        $region17: #{tpu_custom_call.1} parent=11 // pred_check
          %p292 = pneg %p168
        $region18: #{tpu_custom_call.1} parent=11 // pred_check_branch
          %294 = sbr.rel (%p292) target = $region20
        $region19: #{tpu_custom_call.1} parent=11 // pred_region
          %s296 = ssub.s32 16, 16
          %297 = vsyncadd [#allocation11], %s296
          %s299 = sshll.u32 %s4, 4
          %s300 = int_to_ptr.vmem [resolvable:$true] %s299
          %302 = dma.vmem_to_smem %s300, 16, [#allocation10], [#allocation11]
        $region20: #{tpu_custom_call.1} parent=11 // pred_fallthru
          _
        // Predicated region
        $region21: #{tpu_custom_call.1} parent=11 // pred_check
          %p303 = pneg %p189
        $region22: #{tpu_custom_call.1} parent=11 // pred_check_branch
          %305 = sbr.rel (%p303) target = $region24
        $region23: #{tpu_custom_call.1} parent=11 // pred_region
          %s307 = ssub.s32 64, 64
          %308 = vsyncadd [#allocation11], %s307
          %s310 = sshll.u32 %s5, 4
          %s311 = int_to_ptr.vmem [resolvable:$true] %s310
          %313 = dma.vmem_to_smem %s311, 64, [#allocation12], [#allocation11]
        $region24: #{tpu_custom_call.1} parent=11 // pred_fallthru
          _
        // Predicated region
        $region25: #{tpu_custom_call.1} parent=11 // pred_check
          %p314 = pneg %p210
        $region26: #{tpu_custom_call.1} parent=11 // pred_check_branch
          %316 = sbr.rel (%p314) target = $region28
        $region27: #{tpu_custom_call.1} parent=11 // pred_region
          %s318 = ssub.s32 16, 16
          %319 = vsyncadd [#allocation14], %s318
          %s321 = sshll.u32 %s6, 4
          %s322 = int_to_ptr.vmem [resolvable:$true] %s321
          %324 = dma.vmem_to_smem %s322, 16, [#allocation13], [#allocation14]
        $region28: #{tpu_custom_call.1} parent=11 // pred_fallthru
          _
      $region12: #{tpu_custom_call.1} parent=5 // pred_fallthru
        _
      %p325 = scmp.lt.s32.totalorder %s30, 2
      // Predicated region
      $region29: #{tpu_custom_call.1} parent=5 // pred_check
        %p326 = pneg %p325
      $region30: #{tpu_custom_call.1} parent=5 // pred_check_branch
        %328 = sbr.rel (%p326) target = $region32
      $region31: #{tpu_custom_call.1} parent=5 // pred_region
        // Predicated region
        $region33: #{tpu_custom_call.1} parent=31 // pred_check
          %p329 = pneg %p64
        $region34: #{tpu_custom_call.1} parent=31 // pred_check_branch
          %331 = sbr.rel (%p329) target = $region36
        $region35: #{tpu_custom_call.1} parent=31 // pred_region
          %s332 = sand.u32 %s54, 1
          %s333 = scalar_lea.sflag [#allocation3], %s332
          %s334 = sand.u32 %s54, 1
          %s335 = smul.addr %s334, 64
          %s336 = scalar_lea.vmem [#allocation2], %s335
          %s337 = smul.u32 2, %s38
          %s339 = ssub.s32 1024, 1024
          %340 = vsyncadd %s333, %s339
          %s341 = smul.addr %s37, 8
          %s342 = sadd.s32 %s337, %s341
          %s343 = smul.addr %s342, 128
          %s344 = scalar_lea.hbm %s0, %s343
          %s345 = sshll.u32 %s336, 4
          %s346 = int_to_ptr.vmem [resolvable:$true] %s345
          %351 = dma.hbm_to_vmem [thread:$0]  %s344, 1024, %s346, %s333, 128, 128, 8
        $region36: #{tpu_custom_call.1} parent=31 // pred_fallthru
          _
        // Predicated region
        $region37: #{tpu_custom_call.1} parent=31 // pred_check
          %p352 = pneg %p92
        $region38: #{tpu_custom_call.1} parent=31 // pred_check_branch
          %354 = sbr.rel (%p352) target = $region40
        $region39: #{tpu_custom_call.1} parent=31 // pred_region
          %s355 = sand.u32 %s30, 1
          %s356 = scalar_lea.sflag [#allocation7], %s355
          %s357 = sand.u32 %s82, 1
          %s358 = smul.addr %s357, 64
          %s359 = scalar_lea.vmem [#allocation6], %s358
          %s360 = smul.u32 2, %s38
          %s362 = ssub.s32 1024, 1024
          %363 = vsyncadd %s356, %s362
          %s364 = smul.addr %s37, 8
          %s365 = sadd.s32 %s360, %s364
          %s366 = smul.addr %s365, 128
          %s367 = scalar_lea.hbm %s1, %s366
          %s368 = sshll.u32 %s359, 4
          %s369 = int_to_ptr.vmem [resolvable:$true] %s368
          %374 = dma.hbm_to_vmem [thread:$0]  %s367, 1024, %s369, %s356, 128, 128, 8
        $region40: #{tpu_custom_call.1} parent=31 // pred_fallthru
          _
        // Predicated region
        $region41: #{tpu_custom_call.1} parent=31 // pred_check
          %p375 = pneg %p120
        $region42: #{tpu_custom_call.1} parent=31 // pred_check_branch
          %377 = sbr.rel (%p375) target = $region44
        $region43: #{tpu_custom_call.1} parent=31 // pred_region
          %s378 = sand.u32 %s30, 1
          %s379 = scalar_lea.sflag [#allocation7], %s378
          %s380 = sand.u32 %s110, 1
          %s381 = smul.addr %s380, 64
          %s382 = scalar_lea.vmem [#allocation8], %s381
          %s383 = smul.u32 2, %s38
          %s385 = ssub.s32 1024, 1024
          %386 = vsyncadd %s379, %s385
          %s387 = smul.addr %s37, 8
          %s388 = sadd.s32 %s383, %s387
          %s389 = smul.addr %s388, 128
          %s390 = scalar_lea.hbm %s2, %s389
          %s391 = sshll.u32 %s382, 4
          %s392 = int_to_ptr.vmem [resolvable:$true] %s391
          %397 = dma.hbm_to_vmem [thread:$0]  %s390, 1024, %s392, %s379, 128, 128, 8
        $region44: #{tpu_custom_call.1} parent=31 // pred_fallthru
          _
      $region32: #{tpu_custom_call.1} parent=5 // pred_fallthru
        _
      %p398 = scmp.le.s32.totalorder 1, %s30
      %p399 = scmp.lt.s32.totalorder %s30, 3
      %p400 = pnand %p398, %p399
      %p401 = pneg %p400
      // Predicated region
      $region45: #{tpu_custom_call.1} parent=5 // pred_check
        _
      $region46: #{tpu_custom_call.1} parent=5 // pred_check_branch
        %403 = sbr.rel (%p400) target = $region48
      $region47: #{tpu_custom_call.1} parent=5 // pred_region
        %s404 = ssub.s32 %s30, 1
        %s405 = sand.u32 %s57, 1
        %s406 = scalar_lea.sflag [#allocation3], %s405
        %s407 = sand.u32 %s57, 1
        %s408 = smul.addr %s407, 64
        %s409 = scalar_lea.vmem [#allocation2], %s408
        // Predicated region
        $region49: #{tpu_custom_call.1} parent=47 // pred_check
          %p410 = pneg %p70
        $region50: #{tpu_custom_call.1} parent=47 // pred_check_branch
          %412 = sbr.rel (%p410) target = $region52
        $region51: #{tpu_custom_call.1} parent=47 // pred_region
          %413 = dma.done %s406, 1024
        $region52: #{tpu_custom_call.1} parent=47 // pred_fallthru
          _
        %s414 = sand.u32 %s35, 1
        %s415 = scalar_lea.sflag [#allocation7], %s414
        %s416 = sand.u32 %s85, 1
        %s417 = smul.addr %s416, 64
        %s418 = scalar_lea.vmem [#allocation6], %s417
        // Predicated region
        $region53: #{tpu_custom_call.1} parent=47 // pred_check
          %p419 = pneg %p98
        $region54: #{tpu_custom_call.1} parent=47 // pred_check_branch
          %421 = sbr.rel (%p419) target = $region56
        $region55: #{tpu_custom_call.1} parent=47 // pred_region
          %422 = dma.done %s415, 1024
        $region56: #{tpu_custom_call.1} parent=47 // pred_fallthru
          _
        %s423 = sand.u32 %s35, 1
        %s424 = scalar_lea.sflag [#allocation7], %s423
        %s425 = sand.u32 %s113, 1
        %s426 = smul.addr %s425, 64
        %s427 = scalar_lea.vmem [#allocation8], %s426
        // Predicated region
        $region57: #{tpu_custom_call.1} parent=47 // pred_check
          %p428 = pneg %p126
        $region58: #{tpu_custom_call.1} parent=47 // pred_check_branch
          %430 = sbr.rel (%p428) target = $region60
        $region59: #{tpu_custom_call.1} parent=47 // pred_region
          %431 = dma.done %s424, 1024
        $region60: #{tpu_custom_call.1} parent=47 // pred_fallthru
          _
        // Predicated region
        $region61: #{tpu_custom_call.1} parent=47 // pred_check
          %p432 = pneg %p147
        $region62: #{tpu_custom_call.1} parent=47 // pred_check_branch
          %434 = sbr.rel (%p432) target = $region64
        $region63: #{tpu_custom_call.1} parent=47 // pred_region
          %435 = dma.done [#allocation5], 64
        $region64: #{tpu_custom_call.1} parent=47 // pred_fallthru
          _
        // Predicated region
        $region65: #{tpu_custom_call.1} parent=47 // pred_check
          %p436 = pneg %p168
        $region66: #{tpu_custom_call.1} parent=47 // pred_check_branch
          %438 = sbr.rel (%p436) target = $region68
        $region67: #{tpu_custom_call.1} parent=47 // pred_region
          %439 = dma.done [#allocation11], 16
        $region68: #{tpu_custom_call.1} parent=47 // pred_fallthru
          _
        // Predicated region
        $region69: #{tpu_custom_call.1} parent=47 // pred_check
          %p440 = pneg %p189
        $region70: #{tpu_custom_call.1} parent=47 // pred_check_branch
          %442 = sbr.rel (%p440) target = $region72
        $region71: #{tpu_custom_call.1} parent=47 // pred_region
          %443 = dma.done [#allocation11], 64
        $region72: #{tpu_custom_call.1} parent=47 // pred_fallthru
          _
        // Predicated region
        $region73: #{tpu_custom_call.1} parent=47 // pred_check
          %p444 = pneg %p210
        $region74: #{tpu_custom_call.1} parent=47 // pred_check_branch
          %446 = sbr.rel (%p444) target = $region76
        $region75: #{tpu_custom_call.1} parent=47 // pred_region
          %447 = dma.done [#allocation14], 16
        $region76: #{tpu_custom_call.1} parent=47 // pred_fallthru
          _
        %448 = sfence
        %s449 = sand.u32 %s57, 1
        %s450 = scalar_lea.sflag [#allocation3], %s449
        %s451 = sand.u32 %s57, 1
        %s452 = smul.addr %s451, 64
        %s453 = scalar_lea.vmem [#allocation2], %s452
        %p454 = pneg %p70
        %p455 = pneg %p67
        %s456 = sand.u32 %s35, 1
        %s457 = scalar_lea.sflag [#allocation7], %s456
        %s458 = sand.u32 %s85, 1
        %s459 = smul.addr %s458, 64
        %s460 = scalar_lea.vmem [#allocation6], %s459
        %p461 = pneg %p98
        %p462 = pneg %p95
        %s463 = sand.u32 %s35, 1
        %s464 = scalar_lea.sflag [#allocation7], %s463
        %s465 = sand.u32 %s113, 1
        %s466 = smul.addr %s465, 64
        %s467 = scalar_lea.vmem [#allocation8], %s466
        %p468 = pneg %p126
        %p469 = pneg %p123
        %p470 = pneg %p147
        %p471 = pneg %p144
        %p472 = pneg %p168
        %p473 = pneg %p165
        %p474 = pneg %p189
        %p475 = pneg %p186
        %p476 = pneg %p210
        %p477 = pneg %p207
        %p478 = pneg %p238
        %p479 = pneg %p235
        %s480 = sand.u32 %s225, 1
        %s481 = scalar_lea.sflag [#allocation4], %s480
        %s482 = sand.u32 %s225, 1
        %s483 = smul.addr %s482, 64
        %s484 = scalar_lea.vmem [#allocation15], %s483
        %p485 = pneg %p266
        %p486 = pneg %p263
        %s487 = sand.u32 %s253, 1
        %s488 = scalar_lea.sflag [#allocation17], %s487
        %s489 = sand.u32 %s253, 1
        %s490 = smul.addr %s489, 8
        %s491 = scalar_lea.vmem [#allocation16], %s490
        %s492 = smul.u32 2, %s40
        %s493 = smul.u32 2, %s40
        %s494 = smul.u32 2, %s40
        %s495 = smul.u32 2, %s40
        %s496 = sld [smem:[#allocation9]]
        %s497 = sld [smem:[#allocation9 + $0x1]]
        %s498 = sld [smem:[#allocation9 + $0x2]]
        %s499 = sld [smem:[#allocation9 + $0x3]]
        %s500 = sld [smem:[#allocation9 + $0x4]]
        %s501 = sld [smem:[#allocation9 + $0x5]]
        %s502 = sld [smem:[#allocation9 + $0x6]]
        %s503 = sld [smem:[#allocation9 + $0x7]]
        %s504 = sld [smem:[#allocation9 + $0x80]]
        %s505 = sld [smem:[#allocation9 + $0x81]]
        %s506 = sld [smem:[#allocation9 + $0x82]]
        %s507 = sld [smem:[#allocation9 + $0x83]]
        %s508 = sld [smem:[#allocation9 + $0x84]]
        %s509 = sld [smem:[#allocation9 + $0x85]]
        %s510 = sld [smem:[#allocation9 + $0x86]]
        %s511 = sld [smem:[#allocation9 + $0x87]]
        %s512 = sld [smem:[#allocation9 + $0x100]]
        %s513 = sld [smem:[#allocation9 + $0x101]]
        %s514 = sld [smem:[#allocation9 + $0x102]]
        %s515 = sld [smem:[#allocation9 + $0x103]]
        %s516 = sld [smem:[#allocation9 + $0x104]]
        %s517 = sld [smem:[#allocation9 + $0x105]]
        %s518 = sld [smem:[#allocation9 + $0x106]]
        %s519 = sld [smem:[#allocation9 + $0x107]]
        %s520 = sld [smem:[#allocation9 + $0x180]]
        %s521 = sld [smem:[#allocation9 + $0x181]]
        %s522 = sld [smem:[#allocation9 + $0x182]]
        %s523 = sld [smem:[#allocation9 + $0x183]]
        %s524 = sld [smem:[#allocation9 + $0x184]]
        %s525 = sld [smem:[#allocation9 + $0x185]]
        %s526 = sld [smem:[#allocation9 + $0x186]]
        %s527 = sld [smem:[#allocation9 + $0x187]]
        %s528 = sld [smem:[#allocation10]]
        %s529 = sld [smem:[#allocation10 + $0x1]]
        %s530 = sld [smem:[#allocation10 + $0x2]]
        %s531 = sld [smem:[#allocation10 + $0x3]]
        %s532 = sld [smem:[#allocation10 + $0x4]]
        %s533 = sld [smem:[#allocation10 + $0x5]]
        %s534 = sld [smem:[#allocation10 + $0x6]]
        %s535 = sld [smem:[#allocation10 + $0x7]]
        %s536 = sld [smem:[#allocation12]]
        %s537 = sld [smem:[#allocation12 + $0x1]]
        %s538 = sld [smem:[#allocation12 + $0x2]]
        %s539 = sld [smem:[#allocation12 + $0x3]]
        %s540 = sld [smem:[#allocation12 + $0x4]]
        %s541 = sld [smem:[#allocation12 + $0x5]]
        %s542 = sld [smem:[#allocation12 + $0x6]]
        %s543 = sld [smem:[#allocation12 + $0x7]]
        %s544 = sld [smem:[#allocation12 + $0x80]]
        %s545 = sld [smem:[#allocation12 + $0x81]]
        %s546 = sld [smem:[#allocation12 + $0x82]]
        %s547 = sld [smem:[#allocation12 + $0x83]]
        %s548 = sld [smem:[#allocation12 + $0x84]]
        %s549 = sld [smem:[#allocation12 + $0x85]]
        %s550 = sld [smem:[#allocation12 + $0x86]]
        %s551 = sld [smem:[#allocation12 + $0x87]]
        %s552 = sld [smem:[#allocation12 + $0x100]]
        %s553 = sld [smem:[#allocation12 + $0x101]]
        %s554 = sld [smem:[#allocation12 + $0x102]]
        %s555 = sld [smem:[#allocation12 + $0x103]]
        %s556 = sld [smem:[#allocation12 + $0x104]]
        %s557 = sld [smem:[#allocation12 + $0x105]]
        %s558 = sld [smem:[#allocation12 + $0x106]]
        %s559 = sld [smem:[#allocation12 + $0x107]]
        %s560 = sld [smem:[#allocation12 + $0x180]]
        %s561 = sld [smem:[#allocation12 + $0x181]]
        %s562 = sld [smem:[#allocation12 + $0x182]]
        %s563 = sld [smem:[#allocation12 + $0x183]]
        %s564 = sld [smem:[#allocation12 + $0x184]]
        %s565 = sld [smem:[#allocation12 + $0x185]]
        %s566 = sld [smem:[#allocation12 + $0x186]]
        %s567 = sld [smem:[#allocation12 + $0x187]]
        %s568 = sld [smem:[#allocation13]]
        %s569 = sld [smem:[#allocation13 + $0x1]]
        %s570 = sld [smem:[#allocation13 + $0x2]]
        %s571 = sld [smem:[#allocation13 + $0x3]]
        %s572 = sld [smem:[#allocation13 + $0x4]]
        %s573 = sld [smem:[#allocation13 + $0x5]]
        %s574 = sld [smem:[#allocation13 + $0x6]]
        %s575 = sld [smem:[#allocation13 + $0x7]]
        %v576 = vld [vmem:[%s409] sm:$0xff]
        %v577 = vld [vmem:[%s409 + $0x8] sm:$0xff]
        %s578 = scalar_lea.vmem %s409, 16 [#allocation2]
        %v579 = vld [vmem:[%s578] sm:$0xff]
        %v580 = vld [vmem:[%s578 + $0x8] sm:$0xff]
        %s581 = scalar_lea.vmem %s409, 32 [#allocation2]
        %v582 = vld [vmem:[%s581] sm:$0xff]
        %v583 = vld [vmem:[%s581 + $0x8] sm:$0xff]
        %s584 = scalar_lea.vmem %s409, 48 [#allocation2]
        %v585 = vld [vmem:[%s584] sm:$0xff]
        %v586 = vld [vmem:[%s584 + $0x8] sm:$0xff]
        %v587 = vld [vmem:[%s418] sm:$0xff]
        %v588 = vld [vmem:[%s418 + $0x8] sm:$0xff]
        %s589 = scalar_lea.vmem %s418, 16 [#allocation6]
        %v590 = vld [vmem:[%s589] sm:$0xff]
        %v591 = vld [vmem:[%s589 + $0x8] sm:$0xff]
        %s592 = scalar_lea.vmem %s418, 32 [#allocation6]
        %v593 = vld [vmem:[%s592] sm:$0xff]
        %v594 = vld [vmem:[%s592 + $0x8] sm:$0xff]
        %s595 = scalar_lea.vmem %s418, 48 [#allocation6]
        %v596 = vld [vmem:[%s595] sm:$0xff]
        %v597 = vld [vmem:[%s595 + $0x8] sm:$0xff]
        %v598 = vstv %s496
        %v599 = vmul.f32 %v587, %v598
        %v600 = vmul.f32 %v588, %v598
        %v601 = vstv %s528
        %v602 = vadd.f32 %v599, %v601
        %v603 = vadd.f32 %v600, %v601
        %v604 = vstv %s504
        %v605 = vmul.f32 %v590, %v604
        %v606 = vmul.f32 %v591, %v604
        %v607 = vadd.f32 %v602, %v605
        %v608 = vadd.f32 %v603, %v606
        %v609 = vstv %s512
        %v610 = vmul.f32 %v593, %v609
        %v611 = vmul.f32 %v594, %v609
        %v612 = vadd.f32 %v607, %v610
        %v613 = vadd.f32 %v608, %v611
        %v614 = vstv %s520
        %v615 = vmul.f32 %v596, %v614
        %v616 = vmul.f32 %v597, %v614
        %v617 = vadd.f32 %v612, %v615
        %v618 = vadd.f32 %v613, %v616
        %v619 = vstv %s500
        %v620 = vmul.f32 %v587, %v619
        %v621 = vmul.f32 %v588, %v619
        %v622 = vstv %s532
        %v623 = vadd.f32 %v620, %v622
        %v624 = vadd.f32 %v621, %v622
        %v625 = vstv %s508
        %v626 = vmul.f32 %v590, %v625
        %v627 = vmul.f32 %v591, %v625
        %v628 = vadd.f32 %v623, %v626
        %v629 = vadd.f32 %v624, %v627
        %v630 = vstv %s516
        %v631 = vmul.f32 %v593, %v630
        %v632 = vmul.f32 %v594, %v630
        %v633 = vadd.f32 %v628, %v631
        %v634 = vadd.f32 %v629, %v632
        %v635 = vstv %s524
        %v636 = vmul.f32 %v596, %v635
        %v637 = vmul.f32 %v597, %v635
        %v638 = vadd.f32 %v633, %v636
        %v639 = vadd.f32 %v634, %v637
        %v640 = vmul.f32 %v576, %v617
        %v641 = vmul.f32 %v577, %v618
        %v642 = vadd.f32 %v640, %v638
        %v643 = vadd.f32 %v641, %v639
        %v644 = vstv %s497
        %v645 = vmul.f32 %v587, %v644
        %v646 = vmul.f32 %v588, %v644
        %v647 = vstv %s529
        %v648 = vadd.f32 %v645, %v647
        %v649 = vadd.f32 %v646, %v647
        %v650 = vstv %s505
        %v651 = vmul.f32 %v590, %v650
        %v652 = vmul.f32 %v591, %v650
        %v653 = vadd.f32 %v648, %v651
        %v654 = vadd.f32 %v649, %v652
        %v655 = vstv %s513
        %v656 = vmul.f32 %v593, %v655
        %v657 = vmul.f32 %v594, %v655
        %v658 = vadd.f32 %v653, %v656
        %v659 = vadd.f32 %v654, %v657
        %v660 = vstv %s521
        %v661 = vmul.f32 %v596, %v660
        %v662 = vmul.f32 %v597, %v660
        %v663 = vadd.f32 %v658, %v661
        %v664 = vadd.f32 %v659, %v662
        %v665 = vstv %s501
        %v666 = vmul.f32 %v587, %v665
        %v667 = vmul.f32 %v588, %v665
        %v668 = vstv %s533
        %v669 = vadd.f32 %v666, %v668
        %v670 = vadd.f32 %v667, %v668
        %v671 = vstv %s509
        %v672 = vmul.f32 %v590, %v671
        %v673 = vmul.f32 %v591, %v671
        %v674 = vadd.f32 %v669, %v672
        %v675 = vadd.f32 %v670, %v673
        %v676 = vstv %s517
        %v677 = vmul.f32 %v593, %v676
        %v678 = vmul.f32 %v594, %v676
        %v679 = vadd.f32 %v674, %v677
        %v680 = vadd.f32 %v675, %v678
        %v681 = vstv %s525
        %v682 = vmul.f32 %v596, %v681
        %v683 = vmul.f32 %v597, %v681
        %v684 = vadd.f32 %v679, %v682
        %v685 = vadd.f32 %v680, %v683
        %v686 = vmul.f32 %v579, %v663
        %v687 = vmul.f32 %v580, %v664
        %v688 = vadd.f32 %v686, %v684
        %v689 = vadd.f32 %v687, %v685
        %v690 = vstv %s498
        %v691 = vmul.f32 %v587, %v690
        %v692 = vmul.f32 %v588, %v690
        %v693 = vstv %s530
        %v694 = vadd.f32 %v691, %v693
        %v695 = vadd.f32 %v692, %v693
        %v696 = vstv %s506
        %v697 = vmul.f32 %v590, %v696
        %v698 = vmul.f32 %v591, %v696
        %v699 = vadd.f32 %v694, %v697
        %v700 = vadd.f32 %v695, %v698
        %v701 = vstv %s514
        %v702 = vmul.f32 %v593, %v701
        %v703 = vmul.f32 %v594, %v701
        %v704 = vadd.f32 %v699, %v702
        %v705 = vadd.f32 %v700, %v703
        %v706 = vstv %s522
        %v707 = vmul.f32 %v596, %v706
        %v708 = vmul.f32 %v597, %v706
        %v709 = vadd.f32 %v704, %v707
        %v710 = vadd.f32 %v705, %v708
        %v711 = vstv %s502
        %v712 = vmul.f32 %v587, %v711
        %v713 = vmul.f32 %v588, %v711
        %v714 = vstv %s534
        %v715 = vadd.f32 %v712, %v714
        %v716 = vadd.f32 %v713, %v714
        %v717 = vstv %s510
        %v718 = vmul.f32 %v590, %v717
        %v719 = vmul.f32 %v591, %v717
        %v720 = vadd.f32 %v715, %v718
        %v721 = vadd.f32 %v716, %v719
        %v722 = vstv %s518
        %v723 = vmul.f32 %v593, %v722
        %v724 = vmul.f32 %v594, %v722
        %v725 = vadd.f32 %v720, %v723
        %v726 = vadd.f32 %v721, %v724
        %v727 = vstv %s526
        %v728 = vmul.f32 %v596, %v727
        %v729 = vmul.f32 %v597, %v727
        %v730 = vadd.f32 %v725, %v728
        %v731 = vadd.f32 %v726, %v729
        %v732 = vmul.f32 %v582, %v709
        %v733 = vmul.f32 %v583, %v710
        %v734 = vadd.f32 %v732, %v730
        %v735 = vadd.f32 %v733, %v731
        %v736 = vstv %s499
        %v737 = vmul.f32 %v587, %v736
        %v738 = vmul.f32 %v588, %v736
        %v739 = vstv %s531
        %v740 = vadd.f32 %v737, %v739
        %v741 = vadd.f32 %v738, %v739
        %v742 = vstv %s507
        %v743 = vmul.f32 %v590, %v742
        %v744 = vmul.f32 %v591, %v742
        %v745 = vadd.f32 %v740, %v743
        %v746 = vadd.f32 %v741, %v744
        %v747 = vstv %s515
        %v748 = vmul.f32 %v593, %v747
        %v749 = vmul.f32 %v594, %v747
        %v750 = vadd.f32 %v745, %v748
        %v751 = vadd.f32 %v746, %v749
        %v752 = vstv %s523
        %v753 = vmul.f32 %v596, %v752
        %v754 = vmul.f32 %v597, %v752
        %v755 = vadd.f32 %v750, %v753
        %v756 = vadd.f32 %v751, %v754
        %v757 = vstv %s503
        %v758 = vmul.f32 %v587, %v757
        %v759 = vmul.f32 %v588, %v757
        %v760 = vstv %s535
        %v761 = vadd.f32 %v758, %v760
        %v762 = vadd.f32 %v759, %v760
        %v763 = vstv %s511
        %v764 = vmul.f32 %v590, %v763
        %v765 = vmul.f32 %v591, %v763
        %v766 = vadd.f32 %v761, %v764
        %v767 = vadd.f32 %v762, %v765
        %v768 = vstv %s519
        %v769 = vmul.f32 %v593, %v768
        %v770 = vmul.f32 %v594, %v768
        %v771 = vadd.f32 %v766, %v769
        %v772 = vadd.f32 %v767, %v770
        %v773 = vstv %s527
        %v774 = vmul.f32 %v596, %v773
        %v775 = vmul.f32 %v597, %v773
        %v776 = vadd.f32 %v771, %v774
        %v777 = vadd.f32 %v772, %v775
        %v778 = vmul.f32 %v585, %v755
        %v779 = vmul.f32 %v586, %v756
        %v780 = vadd.f32 %v778, %v776
        %v781 = vadd.f32 %v779, %v777
        %v782 = vstv %s536
        %v783 = vmul.f32 %v642, %v782
        %v784 = vmul.f32 %v643, %v782
        %v785 = vstv %s568
        %v786 = vadd.f32 %v783, %v785
        %v787 = vadd.f32 %v784, %v785
        %v788 = vstv %s544
        %v789 = vmul.f32 %v688, %v788
        %v790 = vmul.f32 %v689, %v788
        %v791 = vadd.f32 %v786, %v789
        %v792 = vadd.f32 %v787, %v790
        %v793 = vstv %s552
        %v794 = vmul.f32 %v734, %v793
        %v795 = vmul.f32 %v735, %v793
        %v796 = vadd.f32 %v791, %v794
        %v797 = vadd.f32 %v792, %v795
        %v798 = vstv %s560
        %v799 = vmul.f32 %v780, %v798
        %v800 = vmul.f32 %v781, %v798
        %v801 = vadd.f32 %v796, %v799
        %v802 = vadd.f32 %v797, %v800
        %v803 = vstv %s540
        %v804 = vmul.f32 %v642, %v803
        %v805 = vmul.f32 %v643, %v803
        %v806 = vstv %s572
        %v807 = vadd.f32 %v804, %v806
        %v808 = vadd.f32 %v805, %v806
        %v809 = vstv %s548
        %v810 = vmul.f32 %v688, %v809
        %v811 = vmul.f32 %v689, %v809
        %v812 = vadd.f32 %v807, %v810
        %v813 = vadd.f32 %v808, %v811
        %v814 = vstv %s556
        %v815 = vmul.f32 %v734, %v814
        %v816 = vmul.f32 %v735, %v814
        %v817 = vadd.f32 %v812, %v815
        %v818 = vadd.f32 %v813, %v816
        %v819 = vstv %s564
        %v820 = vmul.f32 %v780, %v819
        %v821 = vmul.f32 %v781, %v819
        %v822 = vadd.f32 %v817, %v820
        %v823 = vadd.f32 %v818, %v821
        %v824 = vmul.f32 %v822, 0.5
        %v825 = vmul.f32 %v823, 0.5
        %v826 = vtanh.pop %v824
        %v827 = vtanh.pop %v825
        %v828 = vld [vmem:[%s427] sm:$0xff]
        %v829 = vld [vmem:[%s427 + $0x8] sm:$0xff]
        %v830 = vmul.f32 %v826, 1.442695
        %v831 = vpow.pop %v830
        %v832 = vmul.f32 %v827, 1.442695
        %v833 = vpow.pop %v832
        %v834 = vmul.f32 %v828, %v831
        %v835 = vmul.f32 %v829, %v833
        %v836 = vadd.f32 %v834, %v801
        %v837 = vadd.f32 %v835, %v802
        %vm838 = vcmask 130048
        %839 = vst.msk [vmem:[%s484] sm:$0xff] %vm838, %v836
        %840 = vst.msk [vmem:[%s484 + $0x8] sm:$0xff] %vm838, %v837
        %v841 = vstv %s537
        %v842 = vmul.f32 %v642, %v841
        %v843 = vmul.f32 %v643, %v841
        %v844 = vstv %s569
        %v845 = vadd.f32 %v842, %v844
        %v846 = vadd.f32 %v843, %v844
        %v847 = vstv %s545
        %v848 = vmul.f32 %v688, %v847
        %v849 = vmul.f32 %v689, %v847
        %v850 = vadd.f32 %v845, %v848
        %v851 = vadd.f32 %v846, %v849
        %v852 = vstv %s553
        %v853 = vmul.f32 %v734, %v852
        %v854 = vmul.f32 %v735, %v852
        %v855 = vadd.f32 %v850, %v853
        %v856 = vadd.f32 %v851, %v854
        %v857 = vstv %s561
        %v858 = vmul.f32 %v780, %v857
        %v859 = vmul.f32 %v781, %v857
        %v860 = vadd.f32 %v855, %v858
        %v861 = vadd.f32 %v856, %v859
        %v862 = vstv %s541
        %v863 = vmul.f32 %v642, %v862
        %v864 = vmul.f32 %v643, %v862
        %v865 = vstv %s573
        %v866 = vadd.f32 %v863, %v865
        %v867 = vadd.f32 %v864, %v865
        %v868 = vstv %s549
        %v869 = vmul.f32 %v688, %v868
        %v870 = vmul.f32 %v689, %v868
        %v871 = vadd.f32 %v866, %v869
        %v872 = vadd.f32 %v867, %v870
        %v873 = vstv %s557
        %v874 = vmul.f32 %v734, %v873
        %v875 = vmul.f32 %v735, %v873
        %v876 = vadd.f32 %v871, %v874
        %v877 = vadd.f32 %v872, %v875
        %v878 = vstv %s565
        %v879 = vmul.f32 %v780, %v878
        %v880 = vmul.f32 %v781, %v878
        %v881 = vadd.f32 %v876, %v879
        %v882 = vadd.f32 %v877, %v880
        %v883 = vmul.f32 %v881, 0.5
        %v884 = vmul.f32 %v882, 0.5
        %v885 = vtanh.pop %v883
        %v886 = vtanh.pop %v884
        %s887 = scalar_lea.vmem %s427, 16 [#allocation8]
        %v888 = vld [vmem:[%s887] sm:$0xff]
        %v889 = vld [vmem:[%s887 + $0x8] sm:$0xff]
        %v890 = vmul.f32 %v885, 1.442695
        %v891 = vpow.pop %v890
        %v892 = vmul.f32 %v886, 1.442695
        %v893 = vpow.pop %v892
        %v894 = vmul.f32 %v888, %v891
        %v895 = vmul.f32 %v889, %v893
        %v896 = vadd.f32 %v894, %v860
        %v897 = vadd.f32 %v895, %v861
        %s898 = scalar_lea.vmem %s484, 16 [#allocation15]
        %899 = vst.msk [vmem:[%s898] sm:$0xff] %vm838, %v896
        %900 = vst.msk [vmem:[%s898 + $0x8] sm:$0xff] %vm838, %v897
        %v901 = vadd.f32 %v826, %v885
        %v902 = vadd.f32 %v827, %v886
        %v903 = vstv %s538
        %v904 = vmul.f32 %v642, %v903
        %v905 = vmul.f32 %v643, %v903
        %v906 = vstv %s570
        %v907 = vadd.f32 %v904, %v906
        %v908 = vadd.f32 %v905, %v906
        %v909 = vstv %s546
        %v910 = vmul.f32 %v688, %v909
        %v911 = vmul.f32 %v689, %v909
        %v912 = vadd.f32 %v907, %v910
        %v913 = vadd.f32 %v908, %v911
        %v914 = vstv %s554
        %v915 = vmul.f32 %v734, %v914
        %v916 = vmul.f32 %v735, %v914
        %v917 = vadd.f32 %v912, %v915
        %v918 = vadd.f32 %v913, %v916
        %v919 = vstv %s562
        %v920 = vmul.f32 %v780, %v919
        %v921 = vmul.f32 %v781, %v919
        %v922 = vadd.f32 %v917, %v920
        %v923 = vadd.f32 %v918, %v921
        %v924 = vstv %s542
        %v925 = vmul.f32 %v642, %v924
        %v926 = vmul.f32 %v643, %v924
        %v927 = vstv %s574
        %v928 = vadd.f32 %v925, %v927
        %v929 = vadd.f32 %v926, %v927
        %v930 = vstv %s550
        %v931 = vmul.f32 %v688, %v930
        %v932 = vmul.f32 %v689, %v930
        %v933 = vadd.f32 %v928, %v931
        %v934 = vadd.f32 %v929, %v932
        %v935 = vstv %s558
        %v936 = vmul.f32 %v734, %v935
        %v937 = vmul.f32 %v735, %v935
        %v938 = vadd.f32 %v933, %v936
        %v939 = vadd.f32 %v934, %v937
        %v940 = vstv %s566
        %v941 = vmul.f32 %v780, %v940
        %v942 = vmul.f32 %v781, %v940
        %v943 = vadd.f32 %v938, %v941
        %v944 = vadd.f32 %v939, %v942
        %v945 = vmul.f32 %v943, 0.5
        %v946 = vmul.f32 %v944, 0.5
        %v947 = vtanh.pop %v945
        %v948 = vtanh.pop %v946
        %s949 = scalar_lea.vmem %s427, 32 [#allocation8]
        %v950 = vld [vmem:[%s949] sm:$0xff]
        %v951 = vld [vmem:[%s949 + $0x8] sm:$0xff]
        %v952 = vmul.f32 %v947, 1.442695
        %v953 = vpow.pop %v952
        %v954 = vmul.f32 %v948, 1.442695
        %v955 = vpow.pop %v954
        %v956 = vmul.f32 %v950, %v953
        %v957 = vmul.f32 %v951, %v955
        %v958 = vadd.f32 %v956, %v922
        %v959 = vadd.f32 %v957, %v923
        %s960 = scalar_lea.vmem %s484, 32 [#allocation15]
        %961 = vst.msk [vmem:[%s960] sm:$0xff] %vm838, %v958
        %962 = vst.msk [vmem:[%s960 + $0x8] sm:$0xff] %vm838, %v959
        %v963 = vadd.f32 %v901, %v947
        %v964 = vadd.f32 %v902, %v948
        %v965 = vstv %s539
        %v966 = vmul.f32 %v642, %v965
        %v967 = vmul.f32 %v643, %v965
        %v968 = vstv %s571
        %v969 = vadd.f32 %v966, %v968
        %v970 = vadd.f32 %v967, %v968
        %v971 = vstv %s547
        %v972 = vmul.f32 %v688, %v971
        %v973 = vmul.f32 %v689, %v971
        %v974 = vadd.f32 %v969, %v972
        %v975 = vadd.f32 %v970, %v973
        %v976 = vstv %s555
        %v977 = vmul.f32 %v734, %v976
        %v978 = vmul.f32 %v735, %v976
        %v979 = vadd.f32 %v974, %v977
        %v980 = vadd.f32 %v975, %v978
        %v981 = vstv %s563
        %v982 = vmul.f32 %v780, %v981
        %v983 = vmul.f32 %v781, %v981
        %v984 = vadd.f32 %v979, %v982
        %v985 = vadd.f32 %v980, %v983
        %v986 = vstv %s543
        %v987 = vmul.f32 %v642, %v986
        %v988 = vmul.f32 %v643, %v986
        %v989 = vstv %s575
        %v990 = vadd.f32 %v987, %v989
        %v991 = vadd.f32 %v988, %v989
        %v992 = vstv %s551
        %v993 = vmul.f32 %v688, %v992
        %v994 = vmul.f32 %v689, %v992
        %v995 = vadd.f32 %v990, %v993
        %v996 = vadd.f32 %v991, %v994
        %v997 = vstv %s559
        %v998 = vmul.f32 %v734, %v997
        %v999 = vmul.f32 %v735, %v997
        %v1000 = vadd.f32 %v995, %v998
        %v1001 = vadd.f32 %v996, %v999
        %v1002 = vstv %s567
        %v1003 = vmul.f32 %v780, %v1002
        %v1004 = vmul.f32 %v781, %v1002
        %v1005 = vadd.f32 %v1000, %v1003
        %v1006 = vadd.f32 %v1001, %v1004
        %v1007 = vmul.f32 %v1005, 0.5
        %v1008 = vmul.f32 %v1006, 0.5
        %v1009 = vtanh.pop %v1007
        %v1010 = vtanh.pop %v1008
        %s1011 = scalar_lea.vmem %s427, 48 [#allocation8]
        %v1012 = vld [vmem:[%s1011] sm:$0xff]
        %v1013 = vld [vmem:[%s1011 + $0x8] sm:$0xff]
        %v1014 = vmul.f32 %v1009, 1.442695
        %v1015 = vpow.pop %v1014
        %v1016 = vmul.f32 %v1010, 1.442695
        %v1017 = vpow.pop %v1016
        %v1018 = vmul.f32 %v1012, %v1015
        %v1019 = vmul.f32 %v1013, %v1017
        %v1020 = vadd.f32 %v1018, %v984
        %v1021 = vadd.f32 %v1019, %v985
        %s1022 = scalar_lea.vmem %s484, 48 [#allocation15]
        %1023 = vst.msk [vmem:[%s1022] sm:$0xff] %vm838, %v1020
        %1024 = vst.msk [vmem:[%s1022 + $0x8] sm:$0xff] %vm838, %v1021
        %v1025 = vadd.f32 %v963, %v1009
        %v1026 = vadd.f32 %v964, %v1010
        %v1027 = vsel %vm838, %v1025, 0.0
        %v1028 = vsel %vm838, %v1026, 0.0
        %v1029 = vadd.f32 %v1027, %v1028
        %1030 = vadd.xlane.f32.xlu0 %v1029
        %v1031 = vpop.xlane.xlu0 %1030
        %v1032 = vrot.slane %v1031, 4
        %v1033 = vadd.f32 %v1031, %v1032
        %v1034 = vrot.slane %v1033, 2
        %v1035 = vadd.f32 %v1033, %v1034
        %v1036 = vrot.slane %v1035, 1
        %v1037 = vadd.f32 %v1035, %v1036
        %s1038 = vtos %v1037
        %v1039 = vstv %s1038
        %1040 = vst [vmem:[%s491] sm:$0xff] %v1039
        %s1041 = sand.u32 %s225, 1
        %s1042 = scalar_lea.sflag [#allocation4], %s1041
        %s1043 = sand.u32 %s225, 1
        %s1044 = smul.addr %s1043, 64
        %s1045 = scalar_lea.vmem [#allocation15], %s1044
        %s1046 = sand.u32 %s253, 1
        %s1047 = scalar_lea.sflag [#allocation17], %s1046
        %s1048 = sand.u32 %s253, 1
        %s1049 = smul.addr %s1048, 8
        %s1050 = scalar_lea.vmem [#allocation16], %s1049
        // Predicated region
        $region77: #{tpu_custom_call.1} parent=47 // pred_check
          %p1051 = pneg %p235
        $region78: #{tpu_custom_call.1} parent=47 // pred_check_branch
          %1053 = sbr.rel (%p1051) target = $region80
        $region79: #{tpu_custom_call.1} parent=47 // pred_region
          %s1054 = smul.u32 2, %s40
          %s1056 = ssub.s32 1024, 1024
          %1057 = vsyncadd %s1042, %s1056
          %s1058 = smul.addr %s39, 8
          %s1059 = sadd.s32 %s1054, %s1058
          %s1060 = smul.addr %s1059, 128
          %s1061 = scalar_lea.hbm %s7, %s1060
          %s1062 = sshll.u32 %s1045, 4
          %s1063 = int_to_ptr.vmem [resolvable:$true] %s1062
          %1068 = dma.vmem_to_hbm [thread:$0]  %s1063, 1024, %s1061, %s1042, 128, 128, 8
        $region80: #{tpu_custom_call.1} parent=47 // pred_fallthru
          _
        // Predicated region
        $region81: #{tpu_custom_call.1} parent=47 // pred_check
          %p1069 = pneg %p263
        $region82: #{tpu_custom_call.1} parent=47 // pred_check_branch
          %1071 = sbr.rel (%p1069) target = $region84
        $region83: #{tpu_custom_call.1} parent=47 // pred_region
          %s1073 = ssub.s32 128, 128
          %1074 = vsyncadd %s1047, %s1073
          %s1075 = sadd.s32 %s40, %s39
          %s1076 = smul.addr %s1075, 128
          %s1077 = scalar_lea.hbm %s8, %s1076
          %s1079 = sshll.u32 %s1050, 4
          %s1080 = int_to_ptr.vmem [resolvable:$true] %s1079
          %1082 = dma.vmem_to_hbm [thread:$0]  %s1080, 128, %s1077, %s1047
        $region84: #{tpu_custom_call.1} parent=47 // pred_fallthru
          _
      $region48: #{tpu_custom_call.1} parent=5 // pred_fallthru
        _
      %p1083 = scmp.le.s32.totalorder 2, %s30
      // Predicated region
      $region85: #{tpu_custom_call.1} parent=5 // pred_check
        %p1084 = pneg %p1083
      $region86: #{tpu_custom_call.1} parent=5 // pred_check_branch
        %1086 = sbr.rel (%p1084) target = $region88
      $region87: #{tpu_custom_call.1} parent=5 // pred_region
        %s1087 = ssub.s32 %s30, 2
        // Predicated region
        $region89: #{tpu_custom_call.1} parent=87 // pred_check
          %p1088 = pneg %p241
        $region90: #{tpu_custom_call.1} parent=87 // pred_check_branch
          %1090 = sbr.rel (%p1088) target = $region92
        $region91: #{tpu_custom_call.1} parent=87 // pred_region
          %s1091 = sand.u32 %s226, 1
          %s1092 = scalar_lea.sflag [#allocation4], %s1091
          %s1093 = sand.u32 %s226, 1
          %s1094 = smul.addr %s1093, 64
          %s1095 = scalar_lea.vmem [#allocation15], %s1094
          %1096 = dma.done %s1092, 1024
        $region92: #{tpu_custom_call.1} parent=87 // pred_fallthru
          _
        // Predicated region
        $region93: #{tpu_custom_call.1} parent=87 // pred_check
          %p1097 = pneg %p269
        $region94: #{tpu_custom_call.1} parent=87 // pred_check_branch
          %1099 = sbr.rel (%p1097) target = $region96
        $region95: #{tpu_custom_call.1} parent=87 // pred_region
          %s1100 = sand.u32 %s254, 1
          %s1101 = scalar_lea.sflag [#allocation17], %s1100
          %s1102 = sand.u32 %s254, 1
          %s1103 = smul.addr %s1102, 8
          %s1104 = scalar_lea.vmem [#allocation16], %s1103
          %1105 = dma.done %s1101, 128
        $region96: #{tpu_custom_call.1} parent=87 // pred_fallthru
          _
      $region88: #{tpu_custom_call.1} parent=5 // pred_fallthru
        _
    $region6: #{tpu_custom_call.1} parent=1 // loop_footer
      %s34 = sadd.s32 1, %s30
    $region7: #{tpu_custom_call.1} parent=1 // loop_footer_branch
      %29 = sbr.rel target = $region3
    $region8: #{tpu_custom_call.1} parent=1 // loop_exit
      _
    %1106 = vsyncpa [#allocation3], 1
    %s1107 = scalar_lea.sflag [#allocation3], 1
    %1108 = vsyncpa %s1107, 1
    %1109 = vsyncpa [#allocation7], 1
    %s1110 = scalar_lea.sflag [#allocation7], 1
    %1111 = vsyncpa %s1110, 1
    %1112 = vsyncpa [#allocation4], 1
    %s1113 = scalar_lea.sflag [#allocation4], 1
    %1114 = vsyncpa %s1113, 1
    %1115 = vsyncpa [#allocation17], 1
    %s1116 = scalar_lea.sflag [#allocation17], 1
    %1117 = vsyncpa %s1116, 1
    %1118 = vsyncpa [#allocation5], 1
    %s1119 = scalar_lea.sflag [#allocation5], 1
    %1120 = vsyncpa %s1119, 1
    %1121 = vsyncpa [#allocation11], 1
    %1122 = vsyncpa [#allocation14], 1

</llo_original>
